<compile_context>
chip_gen: v7x
topology: tpu7x:2x2x1
jax: 0.10.0
libtpu: 0.0.40
codegen_flags: <defaults>
</compile_context>

<pallas_src>
import functools

import jax
import jax.numpy as jnp
from jax.experimental import pallas as pl
from jax.experimental.pallas import tpu as pltpu


def _self_attention_kernel(q_ref, val_ref, w1t_ref, b1_ref, vw_ref, vb_ref,
                           ctx_ref, score_ref, *, s_actual):
    # q_ref:   (BB, S_pad, IN)    val_ref: (BB, S_pad, DV)
    # w1t_ref: (IN, OUT)          b1_ref:  (1, OUT)
    # vw_ref:  (1, OUT)           vb_ref:  (1, 1)
    # ctx_ref: (BB, DV)           score_ref: (BB, S_pad)
    BB, S_pad, IN = q_ref.shape
    OUT = w1t_ref.shape[1]

    # W1(query): one merged (BB*S_pad, IN) x (IN, OUT) MXU matmul over the whole
    # batch block.  The reshape is layout-free because the wrapper pads S_pad to
    # a multiple of the sublane pack (8 for f32 inputs, 16 for bf16).
    q2 = q_ref[...].reshape(BB * S_pad, IN)
    h = jnp.tanh(
        jnp.dot(q2, w1t_ref[...],
                preferred_element_type=jnp.float32,
                precision=jax.lax.Precision.HIGHEST)
        + b1_ref[...])                                          # (BB*S_pad, OUT) f32

    # V(h): degenerate N=1 matmul done as a VPU multiply + lane reduce.
    h3 = h.reshape(BB, S_pad, OUT)                              # layout-free (f32, S_pad % 8 == 0)
    score = jnp.sum(h3 * vw_ref[...], axis=-1) + vb_ref[...]    # (BB, S_pad)
    score_ref[...] = score                                      # sublane+lane dense 2-D store

    # Softmax over the sequence axis (PyTorch dim=1).  Padded sequence positions
    # (if any) are masked to -inf so they get exactly zero weight.
    if s_actual < S_pad:
        valid = jax.lax.broadcasted_iota(jnp.int32, (BB, S_pad), 1) < s_actual
        score = jnp.where(valid, score, -jnp.inf)
    m = jnp.max(score, axis=-1, keepdims=True)                  # (BB, 1)
    e = jnp.exp(score - m)                                      # (BB, S_pad)
    att = e / jnp.sum(e, axis=-1, keepdims=True)                # exact normalization

    # context_vector = sum_S(weights * values): VPU multiply + sublane reduce,
    # accumulated in f32 (exact match to the elementwise PyTorch formulation).
    ctx_ref[...] = jnp.sum(att[:, :, None] * val_ref[...], axis=1)   # (BB, DV)


def _ceil_to(x, m):
    return -(-x // m) * m


def _vmem_block_bytes(bb, s_pad, in_dim, dv, out_dim, in_itemsize):
    """Rough per-step VMEM footprint: double-buffered input/output blocks, the
    f32 tanh intermediate (lane-padded to 128), and two copies of the resident
    weights (conservative even when they end up single-buffered)."""
    lane, sub = 128, 8
    q_blk = bb * s_pad * _ceil_to(in_dim, lane) * in_itemsize
    v_blk = bb * s_pad * _ceil_to(dv, lane) * in_itemsize
    ctx_blk = _ceil_to(bb, sub) * _ceil_to(dv, lane) * 4
    score_blk = _ceil_to(bb, sub) * _ceil_to(s_pad, lane) * 4
    h_buf = bb * s_pad * _ceil_to(out_dim, lane) * 4
    weights = (_ceil_to(in_dim, sub) * _ceil_to(out_dim, lane) * in_itemsize
               + 3 * sub * lane * 4)
    return 2 * (q_blk + v_blk + ctx_blk + score_blk) + h_buf + 2 * weights


def _tpu_defaults():
    """(two_tensorcores, vmem_budget_bytes, vmem_limit_bytes) per generation."""
    try:
        kind = jax.devices()[0].device_kind.lower()
    except Exception:
        kind = ""
    single_tc = any(t in kind for t in ("v5e", "v5 lite", "v5lite",
                                        "v6e", "v6 lite", "v6lite"))
    if "v7" in kind:
        return True, 40 << 20, 48 << 20             # v7x: 64 MiB physical VMEM
    if single_tc or any(t in kind for t in ("v4", "v5", "v6")):
        return (not single_tc), 48 << 20, 64 << 20  # 128 MiB physical VMEM
    return True, 40 << 20, 48 << 20                 # unknown: v7x-conservative


def _pick_batch_block(B, s_pad, in_dim, dv, out_dim, in_itemsize, *,
                      two_tc, vmem_budget, target_bytes=1 << 20):
    """Batch block sized by bytes, not rows: target >= ~1 MiB of (query+values)
    DMA per grid step (amortizes the ~0.35us fixed per-step overhead), capped by
    the per-generation VMEM budget.  BB stays sublane-friendly (BB % 8 == 0 or
    BB == B) so the 2-D output blocks remain (8,128)-legal."""
    divisors = [d for d in range(1, B + 1)
                if B % d == 0 and (d % 8 == 0 or d == B)]
    fits = [d for d in divisors
            if _vmem_block_bytes(d, s_pad, in_dim, dv, out_dim,
                                 in_itemsize) <= vmem_budget]
    if not fits:
        fits = [divisors[0]]

    def step_bytes(d):
        return d * s_pad * (in_dim + dv) * in_itemsize

    big = [d for d in fits if step_bytes(d) >= target_bytes]
    bb = min(big) if big else max(fits)
    # Force >= 2 grid steps only on chips with 2 TensorCores, and only if the
    # split steps still carry a useful amount of DMA (on single-TC chips the
    # grid is a serial loop, so splitting just doubles per-step overhead).
    if two_tc and bb == B and B > 1:
        split = [d for d in fits if d < B]
        if split and step_bytes(max(split)) >= target_bytes // 2:
            bb = max(split)
    return bb


def self_attention(query, values, w1, b1, vw, vb, *, compute_dtype=jnp.float32):
    """query: (B, S, IN); values: (B, S, DV).
    w1: (OUT, IN), b1: (OUT,)  -- PyTorch nn.Linear(in_units, out_units) layout
    vw: (1, OUT),  vb: (1,)    -- PyTorch nn.Linear(out_units, 1) layout
    Returns (context_vector (B, DV), score (B, S, 1)), both float32.

    compute_dtype=jnp.bfloat16 halves query/values HBM traffic on v6e/v7x
    (accumulation stays f32); keep the default f32 on v5e (no bf16 VPU/EUP).
    """
    B, S, IN = query.shape
    DV = values.shape[-1]
    OUT = w1.shape[0]
    cdt = jnp.dtype(compute_dtype)

    q = jnp.asarray(query, cdt)
    v = jnp.asarray(values, cdt)
    w1t = jnp.asarray(w1, cdt).T                          # (IN, OUT)
    b1_2d = jnp.asarray(b1, jnp.float32).reshape(1, OUT)
    vw_2d = jnp.asarray(vw, jnp.float32).reshape(1, OUT)  # kept as a row (no N=1 matmul)
    vb_2d = jnp.asarray(vb, jnp.float32).reshape(1, 1)

    # Pad S to the sublane pack so the in-kernel (BB,S,IN)<->(BB*S,IN) merges
    # stay layout-free (8 rows for f32, 16 for bf16).  Padded positions are
    # masked to -inf before the softmax, so they contribute exactly zero.
    pack = 8 * (4 // cdt.itemsize)
    S_pad = _ceil_to(S, pack)
    if S_pad != S:
        q = jnp.pad(q, ((0, 0), (0, S_pad - S), (0, 0)))
        v = jnp.pad(v, ((0, 0), (0, S_pad - S), (0, 0)))

    two_tc, vmem_budget, vmem_limit = _tpu_defaults()
    BB = _pick_batch_block(B, S_pad, IN, DV, OUT, cdt.itemsize,
                           two_tc=two_tc, vmem_budget=vmem_budget)
    grid = (B // BB,)

    cost = pl.CostEstimate(
        flops=(2 * B * S_pad * IN * OUT + 3 * B * S_pad * OUT
               + 2 * B * S_pad * DV + 6 * B * S_pad),
        transcendentals=B * S_pad * (OUT + 1),
        bytes_accessed=((q.size + v.size + w1t.size) * cdt.itemsize
                        + (b1_2d.size + vw_2d.size + vb_2d.size) * 4
                        + (B * DV + B * S_pad) * 4),
    )

    def call(single_buffer_weights):
        wmode = ({"pipeline_mode": pl.Buffered(1)}
                 if single_buffer_weights else {})
        grid_spec = pltpu.PrefetchScalarGridSpec(
            num_scalar_prefetch=0,
            grid=grid,
            in_specs=[
                pl.BlockSpec((BB, S_pad, IN), lambda i: (i, 0, 0)),   # query block
                pl.BlockSpec((BB, S_pad, DV), lambda i: (i, 0, 0)),   # values block
                pl.BlockSpec((IN, OUT), lambda i: (0, 0), **wmode),   # W1^T (resident)
                pl.BlockSpec((1, OUT), lambda i: (0, 0), **wmode),    # b1
                pl.BlockSpec((1, OUT), lambda i: (0, 0), **wmode),    # V weight row
                pl.BlockSpec((1, 1), lambda i: (0, 0), **wmode),      # V bias
            ],
            out_specs=[
                pl.BlockSpec((BB, DV), lambda i: (i, 0)),      # context (2-D dense)
                pl.BlockSpec((BB, S_pad), lambda i: (i, 0)),   # score   (2-D dense)
            ],
        )
        return pl.pallas_call(
            functools.partial(_self_attention_kernel, s_actual=S),
            out_shape=(
                jax.ShapeDtypeStruct((B, DV), jnp.float32),
                jax.ShapeDtypeStruct((B, S_pad), jnp.float32),
            ),
            grid_spec=grid_spec,
            compiler_params=pltpu.CompilerParams(
                dimension_semantics=("parallel",),
                vmem_limit_bytes=vmem_limit),
            cost_estimate=cost,
        )(q, v, w1t, b1_2d, vw_2d, vb_2d)

    try:
        ctx2, score2 = call(True)        # single-buffer the resident weights
    except Exception:
        # Fallback if this jax build rejects pl.Buffered(1) on a BlockSpec.
        ctx2, score2 = call(False)

    # Wrapper-side layout plumbing only: trim sequence padding, restore the
    # PyTorch (B, S, 1) score shape.
    return ctx2, score2[:, :S].reshape(B, S, 1)


def _reference(query, values, w1, b1, vw, vb):
    h = jnp.tanh(jnp.einsum("bsi,oi->bso", query, w1,
                            precision=jax.lax.Precision.HIGHEST) + b1)
    score = jnp.einsum("bso,ko->bsk", h, vw,
                       precision=jax.lax.Precision.HIGHEST) + vb
    w = jax.nn.softmax(score, axis=1)
    ctx = jnp.sum(w * values, axis=1)
    return ctx, score


def _run_case(key, B, S, IN, OUT, DV):
    kq, kv, kw1, kb1, kvw, kvb = jax.random.split(key, 6)
    query = jax.random.normal(kq, (B, S, IN), dtype=jnp.float32)
    values = jax.random.normal(kv, (B, S, DV), dtype=jnp.float32)

    # Deterministic parameter init (uniform, a la nn.Linear default bounds).
    lim1 = 1.0 / (IN ** 0.5)
    w1 = jax.random.uniform(kw1, (OUT, IN), minval=-lim1, maxval=lim1,
                            dtype=jnp.float32)
    b1 = jax.random.uniform(kb1, (OUT,), minval=-lim1, maxval=lim1,
                            dtype=jnp.float32)
    lim2 = 1.0 / (OUT ** 0.5)
    vw = jax.random.uniform(kvw, (1, OUT), minval=-lim2, maxval=lim2,
                            dtype=jnp.float32)
    vb = jax.random.uniform(kvb, (1,), minval=-lim2, maxval=lim2,
                            dtype=jnp.float32)

    ctx, score = self_attention(query, values, w1, b1, vw, vb)
    jax.block_until_ready((ctx, score))

    ctx_ref, score_ref = _reference(query, values, w1, b1, vw, vb)
    assert ctx.shape == (B, DV) and score.shape == (B, S, 1)
    assert jnp.allclose(score, score_ref, atol=1e-4, rtol=1e-4), \
        float(jnp.max(jnp.abs(score - score_ref)))
    assert jnp.allclose(ctx, ctx_ref, atol=1e-4, rtol=1e-4), \
        float(jnp.max(jnp.abs(ctx - ctx_ref)))


if __name__ == "__main__":
    key = jax.random.PRNGKey(0)
    # Shapes implied by the module forward: (batch, seq, feature) query/values.
    _run_case(jax.random.fold_in(key, 0), B=8, S=8, IN=32, OUT=16, DV=32)
    # Sublane-unaligned sequence length exercises the in-wrapper padding path.
    _run_case(jax.random.fold_in(key, 1), B=8, S=10, IN=32, OUT=16, DV=32)
    print("KERNEL_OK")
</pallas_src>

<mosaic_0001>
module attributes {stable_mosaic.version = 11 : i64} {
  func.func @_self_attention_kernel(%arg0: i32, %arg1: memref<8x8x32xf32, #tpu.memory_space<vmem>>, %arg2: memref<8x8x32xf32, #tpu.memory_space<vmem>>, %arg3: memref<32x16xf32, #tpu.memory_space<vmem>>, %arg4: memref<1x16xf32, #tpu.memory_space<vmem>>, %arg5: memref<1x16xf32, #tpu.memory_space<vmem>>, %arg6: memref<1x1xf32, #tpu.memory_space<vmem>>, %arg7: memref<8x32xf32, #tpu.memory_space<vmem>>, %arg8: memref<8x8xf32, #tpu.memory_space<vmem>>) attributes {dimension_semantics = [#tpu.dimension_semantics<parallel>], iteration_bounds = array<i64: 1>, scalar_prefetch = 0 : i64, scratch_operands = 0 : i64, tpu.core_type = #tpu.core_type<tc>, window_params = [{transform_indices = @transform_0, window_bounds = array<i64: 8, 8, 32>}, {transform_indices = @transform_1, window_bounds = array<i64: 8, 8, 32>}, {pipeline_mode = #tpu.pipeline_mode<synchronous>, transform_indices = @transform_2, window_bounds = array<i64: 32, 16>}, {pipeline_mode = #tpu.pipeline_mode<synchronous>, transform_indices = @transform_3, window_bounds = array<i64: 1, 16>}, {pipeline_mode = #tpu.pipeline_mode<synchronous>, transform_indices = @transform_4, window_bounds = array<i64: 1, 16>}, {pipeline_mode = #tpu.pipeline_mode<synchronous>, transform_indices = @transform_5, window_bounds = array<i64: 1, 1>}, {transform_indices = @transform_6, window_bounds = array<i64: 8, 32>}, {transform_indices = @transform_7, window_bounds = array<i64: 8, 8>}]} {
    %c0 = arith.constant 0 : index
    %c0_0 = arith.constant 0 : index
    %c0_1 = arith.constant 0 : index
    %0 = vector.load %arg1[%c0, %c0_0, %c0_1] : memref<8x8x32xf32, #tpu.memory_space<vmem>>, vector<8x8x32xf32>
    %1 = vector.shape_cast %0 : vector<8x8x32xf32> to vector<64x32xf32>
    %c0_2 = arith.constant 0 : index
    %c0_3 = arith.constant 0 : index
    %2 = vector.load %arg3[%c0_2, %c0_3] : memref<32x16xf32, #tpu.memory_space<vmem>>, vector<32x16xf32>
    %cst = arith.constant dense<0.000000e+00> : vector<64x16xf32>
    %3 = tpu.matmul %1, %2, %cst {dimension_numbers = #tpu.dot_dimension_numbers<[1], [0], [0], [1], [0, 0, 1, 1], [], []>, precision = #tpu.contract_precision<fp32>} : vector<64x32xf32>, vector<32x16xf32>, vector<64x16xf32> -> vector<64x16xf32>
    %c0_4 = arith.constant 0 : index
    %c0_5 = arith.constant 0 : index
    %4 = vector.load %arg4[%c0_4, %c0_5] : memref<1x16xf32, #tpu.memory_space<vmem>>, vector<1x16xf32>
    %5 = vector.broadcast %4 : vector<1x16xf32> to vector<64x16xf32>
    %6 = arith.addf %3, %5 : vector<64x16xf32>
    %7 = math.tanh %6 : vector<64x16xf32>
    %8 = vector.shape_cast %7 : vector<64x16xf32> to vector<8x8x16xf32>
    %c0_6 = arith.constant 0 : index
    %c0_7 = arith.constant 0 : index
    %9 = vector.load %arg5[%c0_6, %c0_7] : memref<1x16xf32, #tpu.memory_space<vmem>>, vector<1x16xf32>
    %10 = vector.shape_cast %9 : vector<1x16xf32> to vector<1x1x16xf32>
    %11 = vector.broadcast %10 : vector<1x1x16xf32> to vector<8x8x16xf32>
    %12 = arith.mulf %8, %11 : vector<8x8x16xf32>
    %cst_8 = arith.constant dense<0.000000e+00> : vector<8x8xf32>
    %13 = vector.multi_reduction <add>, %12, %cst_8 [2] : vector<8x8x16xf32> to vector<8x8xf32>
    %c0_9 = arith.constant 0 : index
    %c0_10 = arith.constant 0 : index
    %14 = vector.load %arg6[%c0_9, %c0_10] : memref<1x1xf32, #tpu.memory_space<vmem>>, vector<1x1xf32>
    %15 = vector.broadcast %14 : vector<1x1xf32> to vector<8x8xf32>
    %16 = arith.addf %13, %15 : vector<8x8xf32>
    %c0_11 = arith.constant 0 : index
    %c0_12 = arith.constant 0 : index
    %17 = vector.load %arg8[%c0_11, %c0_12] : memref<8x8xf32, #tpu.memory_space<vmem>>, vector<8x8xf32>
    tpu.vector_store %arg8[%c0_11, %c0_12], %16 {strides = array<i32>} : memref<8x8xf32, #tpu.memory_space<vmem>>, vector<8x8xf32>,
    %cst_13 = arith.constant dense<0xFF800000> : vector<8xf32>
    %18 = vector.multi_reduction <maximumf>, %16, %cst_13 [1] : vector<8x8xf32> to vector<8xf32>
    %19 = vector.shape_cast %18 : vector<8xf32> to vector<8x1xf32>
    %20 = vector.broadcast %19 : vector<8x1xf32> to vector<8x8xf32>
    %21 = arith.subf %16, %20 : vector<8x8xf32>
    %22 = math.exp %21 : vector<8x8xf32>
    %cst_14 = arith.constant dense<0.000000e+00> : vector<8xf32>
    %23 = vector.multi_reduction <add>, %22, %cst_14 [1] : vector<8x8xf32> to vector<8xf32>
    %24 = vector.shape_cast %23 : vector<8xf32> to vector<8x1xf32>
    %25 = vector.broadcast %24 : vector<8x1xf32> to vector<8x8xf32>
    %26 = arith.divf %22, %25 : vector<8x8xf32>
    %27 = vector.shape_cast %26 : vector<8x8xf32> to vector<8x8x1xf32>
    %c0_15 = arith.constant 0 : index
    %c0_16 = arith.constant 0 : index
    %c0_17 = arith.constant 0 : index
    %28 = vector.load %arg2[%c0_15, %c0_16, %c0_17] : memref<8x8x32xf32, #tpu.memory_space<vmem>>, vector<8x8x32xf32>
    %29 = vector.broadcast %27 : vector<8x8x1xf32> to vector<8x8x32xf32>
    %30 = arith.mulf %29, %28 : vector<8x8x32xf32>
    %cst_18 = arith.constant dense<0.000000e+00> : vector<8x32xf32>
    %31 = vector.multi_reduction <add>, %30, %cst_18 [1] : vector<8x8x32xf32> to vector<8x32xf32>
    %c0_19 = arith.constant 0 : index
    %c0_20 = arith.constant 0 : index
    %32 = vector.load %arg7[%c0_19, %c0_20] : memref<8x32xf32, #tpu.memory_space<vmem>>, vector<8x32xf32>
    tpu.vector_store %arg7[%c0_19, %c0_20], %31 {strides = array<i32>} : memref<8x32xf32, #tpu.memory_space<vmem>>, vector<8x32xf32>,
    return
  }
  func.func @transform_0(%arg0: i32) -> (i32, i32, i32) {
    %c0_i32 = arith.constant 0 : i32
    %c0_i32_0 = arith.constant 0 : i32
    %c0_i32_1 = arith.constant 0 : i32
    return %arg0, %c0_i32, %c0_i32_0 : i32, i32, i32
  }
  func.func @transform_1(%arg0: i32) -> (i32, i32, i32) {
    %c0_i32 = arith.constant 0 : i32
    %c0_i32_0 = arith.constant 0 : i32
    %c0_i32_1 = arith.constant 0 : i32
    return %arg0, %c0_i32, %c0_i32_0 : i32, i32, i32
  }
  func.func @transform_2(%arg0: i32) -> (i32, i32) {
    %c0_i32 = arith.constant 0 : i32
    %c0_i32_0 = arith.constant 0 : i32
    %c0_i32_1 = arith.constant 0 : i32
    return %c0_i32, %c0_i32_0 : i32, i32
  }
  func.func @transform_3(%arg0: i32) -> (i32, i32) {
    %c0_i32 = arith.constant 0 : i32
    %c0_i32_0 = arith.constant 0 : i32
    %c0_i32_1 = arith.constant 0 : i32
    return %c0_i32, %c0_i32_0 : i32, i32
  }
  func.func @transform_4(%arg0: i32) -> (i32, i32) {
    %c0_i32 = arith.constant 0 : i32
    %c0_i32_0 = arith.constant 0 : i32
    %c0_i32_1 = arith.constant 0 : i32
    return %c0_i32, %c0_i32_0 : i32, i32
  }
  func.func @transform_5(%arg0: i32) -> (i32, i32) {
    %c0_i32 = arith.constant 0 : i32
    %c0_i32_0 = arith.constant 0 : i32
    %c0_i32_1 = arith.constant 0 : i32
    return %c0_i32, %c0_i32_0 : i32, i32
  }
  func.func @transform_6(%arg0: i32) -> (i32, i32) {
    %c0_i32 = arith.constant 0 : i32
    %c0_i32_0 = arith.constant 0 : i32
    return %arg0, %c0_i32 : i32, i32
  }
  func.func @transform_7(%arg0: i32) -> (i32, i32) {
    %c0_i32 = arith.constant 0 : i32
    %c0_i32_0 = arith.constant 0 : i32
    return %arg0, %c0_i32 : i32, i32
  }
}

module attributes {stable_mosaic.version = 11 : i64} {
  func.func @_self_attention_kernel(%arg0: i32, %arg1: memref<8x8x32xf32, #tpu.memory_space<vmem>>, %arg2: memref<8x8x32xf32, #tpu.memory_space<vmem>>, %arg3: memref<32x16xf32, #tpu.memory_space<vmem>>, %arg4: memref<1x16xf32, #tpu.memory_space<vmem>>, %arg5: memref<1x16xf32, #tpu.memory_space<vmem>>, %arg6: memref<1x1xf32, #tpu.memory_space<vmem>>, %arg7: memref<8x32xf32, #tpu.memory_space<vmem>>, %arg8: memref<8x8xf32, #tpu.memory_space<vmem>>) attributes {dimension_semantics = [#tpu.dimension_semantics<parallel>], iteration_bounds = array<i64: 1>, scalar_prefetch = 0 : i64, scratch_operands = 0 : i64, tpu.core_type = #tpu.core_type<tc>, window_params = [{transform_indices = @transform_0, window_bounds = array<i64: 8, 8, 32>}, {transform_indices = @transform_1, window_bounds = array<i64: 8, 8, 32>}, {pipeline_mode = #tpu.pipeline_mode<synchronous>, transform_indices = @transform_2, window_bounds = array<i64: 32, 16>}, {pipeline_mode = #tpu.pipeline_mode<synchronous>, transform_indices = @transform_3, window_bounds = array<i64: 1, 16>}, {pipeline_mode = #tpu.pipeline_mode<synchronous>, transform_indices = @transform_4, window_bounds = array<i64: 1, 16>}, {pipeline_mode = #tpu.pipeline_mode<synchronous>, transform_indices = @transform_5, window_bounds = array<i64: 1, 1>}, {transform_indices = @transform_6, window_bounds = array<i64: 8, 32>}, {transform_indices = @transform_7, window_bounds = array<i64: 8, 8>}]} {
    %c0 = arith.constant 0 : index
    %c0_0 = arith.constant 0 : index
    %c0_1 = arith.constant 0 : index
    %0 = vector.load %arg1[%c0, %c0_0, %c0_1] : memref<8x8x32xf32, #tpu.memory_space<vmem>>, vector<8x8x32xf32>
    %1 = vector.shape_cast %0 : vector<8x8x32xf32> to vector<64x32xf32>
    %c0_2 = arith.constant 0 : index
    %c0_3 = arith.constant 0 : index
    %2 = vector.load %arg3[%c0_2, %c0_3] : memref<32x16xf32, #tpu.memory_space<vmem>>, vector<32x16xf32>
    %cst = arith.constant dense<0.000000e+00> : vector<64x16xf32>
    %3 = tpu.matmul %1, %2, %cst {dimension_numbers = #tpu.dot_dimension_numbers<[1], [0], [0], [1], [0, 0, 1, 1], [], []>, precision = #tpu.contract_precision<fp32>} : vector<64x32xf32>, vector<32x16xf32>, vector<64x16xf32> -> vector<64x16xf32>
    %c0_4 = arith.constant 0 : index
    %c0_5 = arith.constant 0 : index
    %4 = vector.load %arg4[%c0_4, %c0_5] : memref<1x16xf32, #tpu.memory_space<vmem>>, vector<1x16xf32>
    %5 = vector.broadcast %4 : vector<1x16xf32> to vector<64x16xf32>
    %6 = arith.addf %3, %5 : vector<64x16xf32>
    %7 = math.tanh %6 : vector<64x16xf32>
    %8 = vector.shape_cast %7 : vector<64x16xf32> to vector<8x8x16xf32>
    %c0_6 = arith.constant 0 : index
    %c0_7 = arith.constant 0 : index
    %9 = vector.load %arg5[%c0_6, %c0_7] : memref<1x16xf32, #tpu.memory_space<vmem>>, vector<1x16xf32>
    %10 = vector.shape_cast %9 : vector<1x16xf32> to vector<1x1x16xf32>
    %11 = vector.broadcast %10 : vector<1x1x16xf32> to vector<8x8x16xf32>
    %12 = arith.mulf %8, %11 : vector<8x8x16xf32>
    %cst_8 = arith.constant dense<0.000000e+00> : vector<8x8xf32>
    %13 = vector.multi_reduction <add>, %12, %cst_8 [2] : vector<8x8x16xf32> to vector<8x8xf32>
    %c0_9 = arith.constant 0 : index
    %c0_10 = arith.constant 0 : index
    %14 = vector.load %arg6[%c0_9, %c0_10] : memref<1x1xf32, #tpu.memory_space<vmem>>, vector<1x1xf32>
    %15 = vector.broadcast %14 : vector<1x1xf32> to vector<8x8xf32>
    %16 = arith.addf %13, %15 : vector<8x8xf32>
    %c0_11 = arith.constant 0 : index
    %c0_12 = arith.constant 0 : index
    %17 = vector.load %arg8[%c0_11, %c0_12] : memref<8x8xf32, #tpu.memory_space<vmem>>, vector<8x8xf32>
    tpu.vector_store %arg8[%c0_11, %c0_12], %16 {strides = array<i32>} : memref<8x8xf32, #tpu.memory_space<vmem>>, vector<8x8xf32>,
    %cst_13 = arith.constant dense<0xFF800000> : vector<8xf32>
    %18 = vector.multi_reduction <maximumf>, %16, %cst_13 [1] : vector<8x8xf32> to vector<8xf32>
    %19 = vector.shape_cast %18 : vector<8xf32> to vector<8x1xf32>
    %20 = vector.broadcast %19 : vector<8x1xf32> to vector<8x8xf32>
    %21 = arith.subf %16, %20 : vector<8x8xf32>
    %22 = math.exp %21 : vector<8x8xf32>
    %cst_14 = arith.constant dense<0.000000e+00> : vector<8xf32>
    %23 = vector.multi_reduction <add>, %22, %cst_14 [1] : vector<8x8xf32> to vector<8xf32>
    %24 = vector.shape_cast %23 : vector<8xf32> to vector<8x1xf32>
    %25 = vector.broadcast %24 : vector<8x1xf32> to vector<8x8xf32>
    %26 = arith.divf %22, %25 : vector<8x8xf32>
    %27 = vector.shape_cast %26 : vector<8x8xf32> to vector<8x8x1xf32>
    %c0_15 = arith.constant 0 : index
    %c0_16 = arith.constant 0 : index
    %c0_17 = arith.constant 0 : index
    %28 = vector.load %arg2[%c0_15, %c0_16, %c0_17] : memref<8x8x32xf32, #tpu.memory_space<vmem>>, vector<8x8x32xf32>
    %29 = vector.broadcast %27 : vector<8x8x1xf32> to vector<8x8x32xf32>
    %30 = arith.mulf %29, %28 : vector<8x8x32xf32>
    %cst_18 = arith.constant dense<0.000000e+00> : vector<8x32xf32>
    %31 = vector.multi_reduction <add>, %30, %cst_18 [1] : vector<8x8x32xf32> to vector<8x32xf32>
    %c0_19 = arith.constant 0 : index
    %c0_20 = arith.constant 0 : index
    %32 = vector.load %arg7[%c0_19, %c0_20] : memref<8x32xf32, #tpu.memory_space<vmem>>, vector<8x32xf32>
    tpu.vector_store %arg7[%c0_19, %c0_20], %31 {strides = array<i32>} : memref<8x32xf32, #tpu.memory_space<vmem>>, vector<8x32xf32>,
    return
  }
  func.func @transform_0(%arg0: i32) -> (i32, i32, i32) {
    %c0_i32 = arith.constant 0 : i32
    %c0_i32_0 = arith.constant 0 : i32
    %c0_i32_1 = arith.constant 0 : i32
    return %arg0, %c0_i32, %c0_i32_0 : i32, i32, i32
  }
  func.func @transform_1(%arg0: i32) -> (i32, i32, i32) {
    %c0_i32 = arith.constant 0 : i32
    %c0_i32_0 = arith.constant 0 : i32
    %c0_i32_1 = arith.constant 0 : i32
    return %arg0, %c0_i32, %c0_i32_0 : i32, i32, i32
  }
  func.func @transform_2(%arg0: i32) -> (i32, i32) {
    %c0_i32 = arith.constant 0 : i32
    %c0_i32_0 = arith.constant 0 : i32
    %c0_i32_1 = arith.constant 0 : i32
    return %c0_i32, %c0_i32_0 : i32, i32
  }
  func.func @transform_3(%arg0: i32) -> (i32, i32) {
    %c0_i32 = arith.constant 0 : i32
    %c0_i32_0 = arith.constant 0 : i32
    %c0_i32_1 = arith.constant 0 : i32
    return %c0_i32, %c0_i32_0 : i32, i32
  }
  func.func @transform_4(%arg0: i32) -> (i32, i32) {
    %c0_i32 = arith.constant 0 : i32
    %c0_i32_0 = arith.constant 0 : i32
    %c0_i32_1 = arith.constant 0 : i32
    return %c0_i32, %c0_i32_0 : i32, i32
  }
  func.func @transform_5(%arg0: i32) -> (i32, i32) {
    %c0_i32 = arith.constant 0 : i32
    %c0_i32_0 = arith.constant 0 : i32
    %c0_i32_1 = arith.constant 0 : i32
    return %c0_i32, %c0_i32_0 : i32, i32
  }
  func.func @transform_6(%arg0: i32) -> (i32, i32) {
    %c0_i32 = arith.constant 0 : i32
    %c0_i32_0 = arith.constant 0 : i32
    return %arg0, %c0_i32 : i32, i32
  }
  func.func @transform_7(%arg0: i32) -> (i32, i32) {
    %c0_i32 = arith.constant 0 : i32
    %c0_i32_0 = arith.constant 0 : i32
    return %arg0, %c0_i32 : i32, i32
  }
}

</mosaic_0001>

<llo_original>
// kernel: tpu_custom_call.1
$region0: #{tpu_custom_call.1}
  #allocation0 [shape = 'u32[]', space=smem, size = 0x4, offset = 0x4, fixed_abs, tag = 'smem constant byte address 0x4 - core index']
  #allocation1 [shape = 'u32[144,128]{1,0:T(1,128)}', space=vmem, size = 0x12000, scoped, tag = 'internal scratch']
  #allocation2 [shape = 'f32[1,1]{1,0:T(1,128)S(1)}', space=vmem, size = 0x200, scoped, tag = 'scoped memory for tpu_custom_call.1']
  %s0 = inlined_call_operand.hbm [shape: f32[8,8,32], index: 0, kind: input, shape index: {}]
  %s1 = inlined_call_operand.hbm [shape: f32[8,8,32], index: 1, kind: input, shape index: {}]
  %s2 = inlined_call_operand.vmem [shape: f32[32,16], index: 2, kind: input, shape index: {}]
  %s3 = inlined_call_operand.vmem [shape: f32[1,16], index: 3, kind: input, shape index: {}]
  %s4 = inlined_call_operand.vmem [shape: f32[1,16], index: 4, kind: input, shape index: {}]
  %s5 = inlined_call_operand.<no memory space> [shape: f32[1,1], index: 5, kind: input, shape index: {}]
  %s6 = inlined_call_operand.hbm [shape: f32[8,32], index: 6, kind: output, shape index: {0}]
  %s7 = inlined_call_operand.hbm [shape: f32[8,8], index: 7, kind: output, shape index: {1}]
  %8 = xla_tuple %s6, %s7
  %s9 = sld [smem:[#allocation0]]
  $region50: #{tpu_custom_call.1} parent=0
    _
  %s11 = ssub.s32 1, %s9
  %s12 = scalar_select 0, %s11, %s9
  %v13 = vstv %s5
  %14 = vst [vmem:[#allocation2] sm:$0x1] %v13
  $region1: #{tpu_custom_call.1} parent=0
    #allocation3 [shape = 'u8[32768]{0}', space=vmem, size = 0x8000, scoped, tag = 'input window, operand 0, single buffered']
    #allocation4 [shape = 's32[1]{0}', space=sflag, size = 0x4, scoped, tag = 'scoped memory for tpu_custom_call.1']
    #allocation5 [shape = 's32[1]{0}', space=sflag, size = 0x4, scoped, tag = 'scoped memory for tpu_custom_call.1']
    #allocation6 [shape = 'u8[32768]{0}', space=vmem, size = 0x8000, scoped, tag = 'input window, operand 1, single buffered']
    #allocation7 [shape = 's32[1]{0}', space=sflag, size = 0x4, scoped, tag = 'scoped memory for tpu_custom_call.1']
    #allocation8 [shape = 'u8[4096]{0}', space=vmem, size = 0x1000, scoped, tag = 'output window, operand 0, single buffered']
    #allocation9 [shape = 'u8[4096]{0}', space=vmem, size = 0x1000, scoped, tag = 'output window, operand 1, single buffered']
    #allocation10 [shape = 's32[1]{0}', space=sflag, size = 0x4, scoped, tag = 'scoped memory for tpu_custom_call.1']
    %15 = vsyncpa [#allocation4], 0
    %16 = vsyncpa [#allocation7], 0
    %17 = vsyncpa [#allocation5], 0
    %18 = vsyncpa [#allocation10], 0
    // Predicated region
    $region2: #{tpu_custom_call.1} parent=1 // pred_check
      _
    $region3: #{tpu_custom_call.1} parent=1 // pred_check_branch
      %20 = sbr.rel (0) target = $region5
    $region4: #{tpu_custom_call.1} parent=1 // pred_region
      %s22 = ssub.s32 1024, 1024
      %23 = vsyncadd [#allocation4], %s22
      %s24 = sshll.u32 [#allocation3], 4
      %s25 = int_to_ptr.vmem [resolvable:$true] %s24
      %30 = dma.hbm_to_vmem [thread:$0]  %s0, 1024, %s25, [#allocation4], 128, 128, 8
    $region5: #{tpu_custom_call.1} parent=1 // pred_fallthru
      _
    // Predicated region
    $region6: #{tpu_custom_call.1} parent=1 // pred_check
      _
    $region7: #{tpu_custom_call.1} parent=1 // pred_check_branch
      %32 = sbr.rel (0) target = $region9
    $region8: #{tpu_custom_call.1} parent=1 // pred_region
      %s34 = ssub.s32 1024, 1024
      %35 = vsyncadd [#allocation7], %s34
      %s36 = sshll.u32 [#allocation6], 4
      %s37 = int_to_ptr.vmem [resolvable:$true] %s36
      %42 = dma.hbm_to_vmem [thread:$0]  %s1, 1024, %s37, [#allocation7], 128, 128, 8
    $region9: #{tpu_custom_call.1} parent=1 // pred_fallthru
      _
    // Predicated region
    $region10: #{tpu_custom_call.1} parent=1 // pred_check
      _
    $region11: #{tpu_custom_call.1} parent=1 // pred_check_branch
      %44 = sbr.rel (0) target = $region13
    $region12: #{tpu_custom_call.1} parent=1 // pred_region
      _
    $region13: #{tpu_custom_call.1} parent=1 // pred_fallthru
      _
    // Predicated region
    $region14: #{tpu_custom_call.1} parent=1 // pred_check
      _
    $region15: #{tpu_custom_call.1} parent=1 // pred_check_branch
      %46 = sbr.rel (0) target = $region17
    $region16: #{tpu_custom_call.1} parent=1 // pred_region
      _
    $region17: #{tpu_custom_call.1} parent=1 // pred_fallthru
      _
    // Predicated region
    $region18: #{tpu_custom_call.1} parent=1 // pred_check
      _
    $region19: #{tpu_custom_call.1} parent=1 // pred_check_branch
      %48 = sbr.rel (0) target = $region21
    $region20: #{tpu_custom_call.1} parent=1 // pred_region
      _
    $region21: #{tpu_custom_call.1} parent=1 // pred_fallthru
      _
    // Predicated region
    $region22: #{tpu_custom_call.1} parent=1 // pred_check
      _
    $region23: #{tpu_custom_call.1} parent=1 // pred_check_branch
      %50 = sbr.rel (0) target = $region25
    $region24: #{tpu_custom_call.1} parent=1 // pred_region
      _
    $region25: #{tpu_custom_call.1} parent=1 // pred_fallthru
      _
    // Predicated region
    $region26: #{tpu_custom_call.1} parent=1 // pred_check
      _
    $region27: #{tpu_custom_call.1} parent=1 // pred_check_branch
      %52 = sbr.rel (0) target = $region29
    $region28: #{tpu_custom_call.1} parent=1 // pred_region
      %53 = dma.done [#allocation4], 1024
    $region29: #{tpu_custom_call.1} parent=1 // pred_fallthru
      _
    // Predicated region
    $region30: #{tpu_custom_call.1} parent=1 // pred_check
      _
    $region31: #{tpu_custom_call.1} parent=1 // pred_check_branch
      %55 = sbr.rel (0) target = $region33
    $region32: #{tpu_custom_call.1} parent=1 // pred_region
      %56 = dma.done [#allocation7], 1024
    $region33: #{tpu_custom_call.1} parent=1 // pred_fallthru
      _
    %v57 = vld [vmem:[#allocation3] sm:$0xff]
    %v58 = vld [vmem:[#allocation3 + $0x8] sm:$0xff]
    %v59 = vld [vmem:[#allocation3 + $0x10] sm:$0xff]
    %v60 = vld [vmem:[#allocation3 + $0x18] sm:$0xff]
    %v61 = vld [vmem:[#allocation3 + $0x20] sm:$0xff]
    %v62 = vld [vmem:[#allocation3 + $0x28] sm:$0xff]
    %v63 = vld [vmem:[#allocation3 + $0x30] sm:$0xff]
    %v64 = vld [vmem:[#allocation3 + $0x38] sm:$0xff]
    %v65 = vld [vmem:[%s2] sm:$0xff]
    %v66 = vld [vmem:[%s2 + $0x8] sm:$0xff]
    %v67 = vld [vmem:[%s2 + $0x10] sm:$0xff]
    %v68 = vld [vmem:[%s2 + $0x18] sm:$0xff]
    %v69 = vld [vmem:[%s3] sm:$0x1]
    %v71 = vlaneseq
    %v72 = vshrl.u32 %v71, 7
    %v73 = vsub.s32 0, %v72
    %v74 = vrot.slane %v69, %v73
    %vm76 = vcmask 261120
    %v78 = vsel %vm76, %v57, 0
    %v81 = vsel %vm76, %v58, 0
    %v84 = vsel %vm76, %v59, 0
    %v87 = vsel %vm76, %v60, 0
    %v90 = vsel %vm76, %v61, 0
    %v93 = vsel %vm76, %v62, 0
    %v96 = vsel %vm76, %v63, 0
    %v99 = vsel %vm76, %v64, 0
    %101 = vmatprep.subr.mxu0 0.0
    %v102 = vand.u32 %v65, 4294901760
    %103 = vmatpush1.msra.mxu0 %v102
    %104 = vmatprep.subr.mxu0 0.0
    %v105 = vand.u32 %v66, 4294901760
    %106 = vmatpush1.msra.mxu0 %v105
    %107 = vmatprep.subr.mxu0 0.0
    %v108 = vand.u32 %v67, 4294901760
    %109 = vmatpush1.msra.mxu0 %v108
    %110 = vmatprep.subr.mxu0 0.0
    %v111 = vand.u32 %v68, 4294901760
    %112 = vmatpush1.msra.mxu0 %v111
    %113 = vmatprep.subr.mxu0 0.0
    %114 = vmatpush1.msra.mxu0 0.0
    %115 = vmatprep.subr.mxu0 0.0
    %116 = vmatpush1.msra.mxu0 0.0
    %117 = vmatprep.subr.mxu0 0.0
    %118 = vmatpush1.msra.mxu0 0.0
    %119 = vmatprep.subr.mxu0 0.0
    %120 = vmatpush1.msra.mxu0 0.0
    %121 = vmatprep.subr.mxu0 0.0
    %122 = vmatpush1.msra.mxu0 0.0
    %123 = vmatprep.subr.mxu0 0.0
    %124 = vmatpush1.msra.mxu0 0.0
    %125 = vmatprep.subr.mxu0 0.0
    %126 = vmatpush1.msra.mxu0 0.0
    %127 = vmatprep.subr.mxu0 0.0
    %128 = vmatpush1.msra.mxu0 0.0
    %129 = vmatprep.subr.mxu0 0.0
    %130 = vmatpush1.msra.mxu0 0.0
    %131 = vmatprep.subr.mxu0 0.0
    %132 = vmatpush1.msra.mxu0 0.0
    %133 = vmatprep.subr.mxu0 0.0
    %134 = vmatpush1.msra.mxu0 0.0
    %135 = vmatprep.subr.mxu0 0.0
    %136 = vmatpush1.msra.mxu0 0.0
    %137 = vmatprep.subr.mxu0 0.0
    %138 = vmatpush1.msra.mxu0 0.0
    %139 = vmatprep.subr.mxu0 0.0
    %140 = vmatpush1.msra.mxu0 0.0
    %141 = vmatprep.subr.mxu0 0.0
    %142 = vmatpush1.msra.mxu0 0.0
    %143 = vmatprep.subr.mxu0 0.0
    %144 = vmatpush1.msra.mxu0 0.0
    %145 = vmatprep.subr.mxu0 0.0
    %146 = vmatpush1.msra.mxu0 0.0
    %147 = vmatprep.subr.mxu0 0.0
    %148 = vmatpush1.msra.mxu0 0.0
    %149 = vmatprep.subr.mxu0 0.0
    %150 = vmatpush1.msra.mxu0 0.0
    %151 = vmatprep.subr.mxu0 0.0
    %152 = vmatpush1.msra.mxu0 0.0
    %153 = vmatprep.subr.mxu0 0.0
    %154 = vmatpush1.msra.mxu0 0.0
    %155 = vmatprep.subr.mxu0 0.0
    %156 = vmatpush1.msra.mxu0 0.0
    %157 = vmatprep.subr.mxu0 0.0
    %158 = vmatpush1.msra.mxu0 0.0
    %159 = vmatprep.subr.mxu0 0.0
    %160 = vmatpush1.msra.mxu0 0.0
    %161 = vmatprep.subr.mxu0 0.0
    %162 = vmatpush1.msra.mxu0 0.0
    %163 = vmatprep.subr.mxu0 0.0
    %164 = vmatpush1.msra.mxu0 0.0
    %165 = vmatprep.subr.mxu0 0.0
    %166 = vmatpush1.msra.mxu0 0.0
    %167 = vmatprep.subr.mxu0 0.0
    %168 = vmatpush1.msra.mxu0 0.0
    %169 = vmatprep.mubr.f32.mxu0 0.0
    %v170 = vand.u32 %v78, 4294901760
    %v171 = vsub.f32 %v78, %v170
    %v172 = vand.u32 %v171, 4294901760
    %v173 = vsub.f32 %v171, %v172
    %v174 = vand.u32 %v173, 4294901760
    %175 = vmatmul.mubr.f32.gmra.mrb[0].mxu0 %v174
    %v176 = vpop.f32.mrb[0].mxu0
    %v177 = vadd.f32 %v74, %v176
    %v178 = vpop.f32.mrb[0].mxu0
    %179 = vmatprep.mubr.f32.mxu0 0.0
    %v180 = vand.u32 %v81, 4294901760
    %v181 = vsub.f32 %v81, %v180
    %v182 = vand.u32 %v181, 4294901760
    %v183 = vsub.f32 %v181, %v182
    %v184 = vand.u32 %v183, 4294901760
    %185 = vmatmul.mubr.f32.gmra.mrb[0].mxu0 %v184
    %v186 = vpop.f32.mrb[0].mxu0
    %v187 = vadd.f32 %v74, %v186
    %v188 = vpop.f32.mrb[0].mxu0
    %189 = vmatprep.mubr.f32.mxu0 0.0
    %v190 = vand.u32 %v84, 4294901760
    %v191 = vsub.f32 %v84, %v190
    %v192 = vand.u32 %v191, 4294901760
    %v193 = vsub.f32 %v191, %v192
    %v194 = vand.u32 %v193, 4294901760
    %195 = vmatmul.mubr.f32.gmra.mrb[0].mxu0 %v194
    %v196 = vpop.f32.mrb[0].mxu0
    %v197 = vadd.f32 %v74, %v196
    %v198 = vpop.f32.mrb[0].mxu0
    %199 = vmatprep.mubr.f32.mxu0 0.0
    %v200 = vand.u32 %v87, 4294901760
    %v201 = vsub.f32 %v87, %v200
    %v202 = vand.u32 %v201, 4294901760
    %v203 = vsub.f32 %v201, %v202
    %v204 = vand.u32 %v203, 4294901760
    %205 = vmatmul.mubr.f32.gmra.mrb[0].mxu0 %v204
    %v206 = vpop.f32.mrb[0].mxu0
    %v207 = vadd.f32 %v74, %v206
    %v208 = vpop.f32.mrb[0].mxu0
    %209 = vmatprep.mubr.f32.mxu0 0.0
    %v210 = vand.u32 %v90, 4294901760
    %v211 = vsub.f32 %v90, %v210
    %v212 = vand.u32 %v211, 4294901760
    %v213 = vsub.f32 %v211, %v212
    %v214 = vand.u32 %v213, 4294901760
    %215 = vmatmul.mubr.f32.gmra.mrb[0].mxu0 %v214
    %v216 = vpop.f32.mrb[0].mxu0
    %v217 = vadd.f32 %v74, %v216
    %v218 = vpop.f32.mrb[0].mxu0
    %219 = vmatprep.mubr.f32.mxu0 0.0
    %v220 = vand.u32 %v93, 4294901760
    %v221 = vsub.f32 %v93, %v220
    %v222 = vand.u32 %v221, 4294901760
    %v223 = vsub.f32 %v221, %v222
    %v224 = vand.u32 %v223, 4294901760
    %225 = vmatmul.mubr.f32.gmra.mrb[0].mxu0 %v224
    %v226 = vpop.f32.mrb[0].mxu0
    %v227 = vadd.f32 %v74, %v226
    %v228 = vpop.f32.mrb[0].mxu0
    %229 = vmatprep.mubr.f32.mxu0 0.0
    %v230 = vand.u32 %v96, 4294901760
    %v231 = vsub.f32 %v96, %v230
    %v232 = vand.u32 %v231, 4294901760
    %v233 = vsub.f32 %v231, %v232
    %v234 = vand.u32 %v233, 4294901760
    %235 = vmatmul.mubr.f32.gmra.mrb[0].mxu0 %v234
    %v236 = vpop.f32.mrb[0].mxu0
    %v237 = vadd.f32 %v74, %v236
    %v238 = vpop.f32.mrb[0].mxu0
    %239 = vmatprep.mubr.f32.mxu0 0.0
    %v240 = vand.u32 %v99, 4294901760
    %v241 = vsub.f32 %v99, %v240
    %v242 = vand.u32 %v241, 4294901760
    %v243 = vsub.f32 %v241, %v242
    %v244 = vand.u32 %v243, 4294901760
    %245 = vmatmul.mubr.f32.gmra.mrb[0].mxu0 %v244
    %v246 = vpop.f32.mrb[0].mxu0
    %v247 = vadd.f32 %v74, %v246
    %v248 = vpop.f32.mrb[0].mxu0
    %249 = vdwg.mxu0
    %250 = vmatprep.subr.mxu0 0.0
    %v251 = vand.u32 %v65, 4294901760
    %v252 = vsub.f32 %v65, %v251
    %v253 = vand.u32 %v252, 4294901760
    %v254 = vsub.f32 %v252, %v253
    %v255 = vand.u32 %v254, 4294901760
    %256 = vmatpush1.msra.mxu0 %v255
    %257 = vmatprep.subr.mxu0 0.0
    %v258 = vand.u32 %v66, 4294901760
    %v259 = vsub.f32 %v66, %v258
    %v260 = vand.u32 %v259, 4294901760
    %v261 = vsub.f32 %v259, %v260
    %v262 = vand.u32 %v261, 4294901760
    %263 = vmatpush1.msra.mxu0 %v262
    %264 = vmatprep.subr.mxu0 0.0
    %v265 = vand.u32 %v67, 4294901760
    %v266 = vsub.f32 %v67, %v265
    %v267 = vand.u32 %v266, 4294901760
    %v268 = vsub.f32 %v266, %v267
    %v269 = vand.u32 %v268, 4294901760
    %270 = vmatpush1.msra.mxu0 %v269
    %271 = vmatprep.subr.mxu0 0.0
    %v272 = vand.u32 %v68, 4294901760
    %v273 = vsub.f32 %v68, %v272
    %v274 = vand.u32 %v273, 4294901760
    %v275 = vsub.f32 %v273, %v274
    %v276 = vand.u32 %v275, 4294901760
    %277 = vmatpush1.msra.mxu0 %v276
    %278 = vmatprep.subr.mxu0 0.0
    %279 = vmatpush1.msra.mxu0 0.0
    %280 = vmatprep.subr.mxu0 0.0
    %281 = vmatpush1.msra.mxu0 0.0
    %282 = vmatprep.subr.mxu0 0.0
    %283 = vmatpush1.msra.mxu0 0.0
    %284 = vmatprep.subr.mxu0 0.0
    %285 = vmatpush1.msra.mxu0 0.0
    %286 = vmatprep.subr.mxu0 0.0
    %287 = vmatpush1.msra.mxu0 0.0
    %288 = vmatprep.subr.mxu0 0.0
    %289 = vmatpush1.msra.mxu0 0.0
    %290 = vmatprep.subr.mxu0 0.0
    %291 = vmatpush1.msra.mxu0 0.0
    %292 = vmatprep.subr.mxu0 0.0
    %293 = vmatpush1.msra.mxu0 0.0
    %294 = vmatprep.subr.mxu0 0.0
    %295 = vmatpush1.msra.mxu0 0.0
    %296 = vmatprep.subr.mxu0 0.0
    %297 = vmatpush1.msra.mxu0 0.0
    %298 = vmatprep.subr.mxu0 0.0
    %299 = vmatpush1.msra.mxu0 0.0
    %300 = vmatprep.subr.mxu0 0.0
    %301 = vmatpush1.msra.mxu0 0.0
    %302 = vmatprep.subr.mxu0 0.0
    %303 = vmatpush1.msra.mxu0 0.0
    %304 = vmatprep.subr.mxu0 0.0
    %305 = vmatpush1.msra.mxu0 0.0
    %306 = vmatprep.subr.mxu0 0.0
    %307 = vmatpush1.msra.mxu0 0.0
    %308 = vmatprep.subr.mxu0 0.0
    %309 = vmatpush1.msra.mxu0 0.0
    %310 = vmatprep.subr.mxu0 0.0
    %311 = vmatpush1.msra.mxu0 0.0
    %312 = vmatprep.subr.mxu0 0.0
    %313 = vmatpush1.msra.mxu0 0.0
    %314 = vmatprep.subr.mxu0 0.0
    %315 = vmatpush1.msra.mxu0 0.0
    %316 = vmatprep.subr.mxu0 0.0
    %317 = vmatpush1.msra.mxu0 0.0
    %318 = vmatprep.subr.mxu0 0.0
    %319 = vmatpush1.msra.mxu0 0.0
    %320 = vmatprep.subr.mxu0 0.0
    %321 = vmatpush1.msra.mxu0 0.0
    %322 = vmatprep.subr.mxu0 0.0
    %323 = vmatpush1.msra.mxu0 0.0
    %324 = vmatprep.subr.mxu0 0.0
    %325 = vmatpush1.msra.mxu0 0.0
    %326 = vmatprep.subr.mxu0 0.0
    %327 = vmatpush1.msra.mxu0 0.0
    %328 = vmatprep.subr.mxu0 0.0
    %329 = vmatpush1.msra.mxu0 0.0
    %330 = vmatprep.subr.mxu0 0.0
    %331 = vmatpush1.msra.mxu0 0.0
    %332 = vmatprep.subr.mxu0 0.0
    %333 = vmatpush1.msra.mxu0 0.0
    %334 = vmatprep.mubr.f32.mxu0 0.0
    %v335 = vand.u32 %v78, 4294901760
    %336 = vmatmul.mubr.f32.gmra.mrb[0].mxu0 %v335
    %v337 = vpop.f32.mrb[0].mxu0
    %v338 = vadd.f32 %v177, %v337
    %v339 = vpop.f32.mrb[0].mxu0
    %340 = vmatprep.mubr.f32.mxu0 0.0
    %v341 = vand.u32 %v81, 4294901760
    %342 = vmatmul.mubr.f32.gmra.mrb[0].mxu0 %v341
    %v343 = vpop.f32.mrb[0].mxu0
    %v344 = vadd.f32 %v187, %v343
    %v345 = vpop.f32.mrb[0].mxu0
    %346 = vmatprep.mubr.f32.mxu0 0.0
    %v347 = vand.u32 %v84, 4294901760
    %348 = vmatmul.mubr.f32.gmra.mrb[0].mxu0 %v347
    %v349 = vpop.f32.mrb[0].mxu0
    %v350 = vadd.f32 %v197, %v349
    %v351 = vpop.f32.mrb[0].mxu0
    %352 = vmatprep.mubr.f32.mxu0 0.0
    %v353 = vand.u32 %v87, 4294901760
    %354 = vmatmul.mubr.f32.gmra.mrb[0].mxu0 %v353
    %v355 = vpop.f32.mrb[0].mxu0
    %v356 = vadd.f32 %v207, %v355
    %v357 = vpop.f32.mrb[0].mxu0
    %358 = vmatprep.mubr.f32.mxu0 0.0
    %v359 = vand.u32 %v90, 4294901760
    %360 = vmatmul.mubr.f32.gmra.mrb[0].mxu0 %v359
    %v361 = vpop.f32.mrb[0].mxu0
    %v362 = vadd.f32 %v217, %v361
    %v363 = vpop.f32.mrb[0].mxu0
    %364 = vmatprep.mubr.f32.mxu0 0.0
    %v365 = vand.u32 %v93, 4294901760
    %366 = vmatmul.mubr.f32.gmra.mrb[0].mxu0 %v365
    %v367 = vpop.f32.mrb[0].mxu0
    %v368 = vadd.f32 %v227, %v367
    %v369 = vpop.f32.mrb[0].mxu0
    %370 = vmatprep.mubr.f32.mxu0 0.0
    %v371 = vand.u32 %v96, 4294901760
    %372 = vmatmul.mubr.f32.gmra.mrb[0].mxu0 %v371
    %v373 = vpop.f32.mrb[0].mxu0
    %v374 = vadd.f32 %v237, %v373
    %v375 = vpop.f32.mrb[0].mxu0
    %376 = vmatprep.mubr.f32.mxu0 0.0
    %v377 = vand.u32 %v99, 4294901760
    %378 = vmatmul.mubr.f32.gmra.mrb[0].mxu0 %v377
    %v379 = vpop.f32.mrb[0].mxu0
    %v380 = vadd.f32 %v247, %v379
    %v381 = vpop.f32.mrb[0].mxu0
    %382 = vdwg.mxu0
    %383 = vmatprep.subr.mxu0 0.0
    %v384 = vand.u32 %v65, 4294901760
    %v385 = vsub.f32 %v65, %v384
    %386 = vmatpush1.msra.mxu0 %v385
    %387 = vmatprep.subr.mxu0 0.0
    %v388 = vand.u32 %v66, 4294901760
    %v389 = vsub.f32 %v66, %v388
    %390 = vmatpush1.msra.mxu0 %v389
    %391 = vmatprep.subr.mxu0 0.0
    %v392 = vand.u32 %v67, 4294901760
    %v393 = vsub.f32 %v67, %v392
    %394 = vmatpush1.msra.mxu0 %v393
    %395 = vmatprep.subr.mxu0 0.0
    %v396 = vand.u32 %v68, 4294901760
    %v397 = vsub.f32 %v68, %v396
    %398 = vmatpush1.msra.mxu0 %v397
    %399 = vmatprep.subr.mxu0 0.0
    %400 = vmatpush1.msra.mxu0 0.0
    %401 = vmatprep.subr.mxu0 0.0
    %402 = vmatpush1.msra.mxu0 0.0
    %403 = vmatprep.subr.mxu0 0.0
    %404 = vmatpush1.msra.mxu0 0.0
    %405 = vmatprep.subr.mxu0 0.0
    %406 = vmatpush1.msra.mxu0 0.0
    %407 = vmatprep.subr.mxu0 0.0
    %408 = vmatpush1.msra.mxu0 0.0
    %409 = vmatprep.subr.mxu0 0.0
    %410 = vmatpush1.msra.mxu0 0.0
    %411 = vmatprep.subr.mxu0 0.0
    %412 = vmatpush1.msra.mxu0 0.0
    %413 = vmatprep.subr.mxu0 0.0
    %414 = vmatpush1.msra.mxu0 0.0
    %415 = vmatprep.subr.mxu0 0.0
    %416 = vmatpush1.msra.mxu0 0.0
    %417 = vmatprep.subr.mxu0 0.0
    %418 = vmatpush1.msra.mxu0 0.0
    %419 = vmatprep.subr.mxu0 0.0
    %420 = vmatpush1.msra.mxu0 0.0
    %421 = vmatprep.subr.mxu0 0.0
    %422 = vmatpush1.msra.mxu0 0.0
    %423 = vmatprep.subr.mxu0 0.0
    %424 = vmatpush1.msra.mxu0 0.0
    %425 = vmatprep.subr.mxu0 0.0
    %426 = vmatpush1.msra.mxu0 0.0
    %427 = vmatprep.subr.mxu0 0.0
    %428 = vmatpush1.msra.mxu0 0.0
    %429 = vmatprep.subr.mxu0 0.0
    %430 = vmatpush1.msra.mxu0 0.0
    %431 = vmatprep.subr.mxu0 0.0
    %432 = vmatpush1.msra.mxu0 0.0
    %433 = vmatprep.subr.mxu0 0.0
    %434 = vmatpush1.msra.mxu0 0.0
    %435 = vmatprep.subr.mxu0 0.0
    %436 = vmatpush1.msra.mxu0 0.0
    %437 = vmatprep.subr.mxu0 0.0
    %438 = vmatpush1.msra.mxu0 0.0
    %439 = vmatprep.subr.mxu0 0.0
    %440 = vmatpush1.msra.mxu0 0.0
    %441 = vmatprep.subr.mxu0 0.0
    %442 = vmatpush1.msra.mxu0 0.0
    %443 = vmatprep.subr.mxu0 0.0
    %444 = vmatpush1.msra.mxu0 0.0
    %445 = vmatprep.subr.mxu0 0.0
    %446 = vmatpush1.msra.mxu0 0.0
    %447 = vmatprep.subr.mxu0 0.0
    %448 = vmatpush1.msra.mxu0 0.0
    %449 = vmatprep.subr.mxu0 0.0
    %450 = vmatpush1.msra.mxu0 0.0
    %451 = vmatprep.subr.mxu0 0.0
    %452 = vmatpush1.msra.mxu0 0.0
    %453 = vmatprep.subr.mxu0 0.0
    %454 = vmatpush1.msra.mxu0 0.0
    %455 = vmatprep.mubr.f32.mxu0 0.0
    %v456 = vand.u32 %v78, 4294901760
    %v457 = vsub.f32 %v78, %v456
    %458 = vmatmul.mubr.f32.gmra.mrb[0].mxu0 %v457
    %v459 = vpop.f32.mrb[0].mxu0
    %v460 = vadd.f32 %v338, %v459
    %v461 = vpop.f32.mrb[0].mxu0
    %462 = vmatprep.mubr.f32.mxu0 0.0
    %v463 = vand.u32 %v81, 4294901760
    %v464 = vsub.f32 %v81, %v463
    %465 = vmatmul.mubr.f32.gmra.mrb[0].mxu0 %v464
    %v466 = vpop.f32.mrb[0].mxu0
    %v467 = vadd.f32 %v344, %v466
    %v468 = vpop.f32.mrb[0].mxu0
    %469 = vmatprep.mubr.f32.mxu0 0.0
    %v470 = vand.u32 %v84, 4294901760
    %v471 = vsub.f32 %v84, %v470
    %472 = vmatmul.mubr.f32.gmra.mrb[0].mxu0 %v471
    %v473 = vpop.f32.mrb[0].mxu0
    %v474 = vadd.f32 %v350, %v473
    %v475 = vpop.f32.mrb[0].mxu0
    %476 = vmatprep.mubr.f32.mxu0 0.0
    %v477 = vand.u32 %v87, 4294901760
    %v478 = vsub.f32 %v87, %v477
    %479 = vmatmul.mubr.f32.gmra.mrb[0].mxu0 %v478
    %v480 = vpop.f32.mrb[0].mxu0
    %v481 = vadd.f32 %v356, %v480
    %v482 = vpop.f32.mrb[0].mxu0
    %483 = vmatprep.mubr.f32.mxu0 0.0
    %v484 = vand.u32 %v90, 4294901760
    %v485 = vsub.f32 %v90, %v484
    %486 = vmatmul.mubr.f32.gmra.mrb[0].mxu0 %v485
    %v487 = vpop.f32.mrb[0].mxu0
    %v488 = vadd.f32 %v362, %v487
    %v489 = vpop.f32.mrb[0].mxu0
    %490 = vmatprep.mubr.f32.mxu0 0.0
    %v491 = vand.u32 %v93, 4294901760
    %v492 = vsub.f32 %v93, %v491
    %493 = vmatmul.mubr.f32.gmra.mrb[0].mxu0 %v492
    %v494 = vpop.f32.mrb[0].mxu0
    %v495 = vadd.f32 %v368, %v494
    %v496 = vpop.f32.mrb[0].mxu0
    %497 = vmatprep.mubr.f32.mxu0 0.0
    %v498 = vand.u32 %v96, 4294901760
    %v499 = vsub.f32 %v96, %v498
    %500 = vmatmul.mubr.f32.gmra.mrb[0].mxu0 %v499
    %v501 = vpop.f32.mrb[0].mxu0
    %v502 = vadd.f32 %v374, %v501
    %v503 = vpop.f32.mrb[0].mxu0
    %504 = vmatprep.mubr.f32.mxu0 0.0
    %v505 = vand.u32 %v99, 4294901760
    %v506 = vsub.f32 %v99, %v505
    %507 = vmatmul.mubr.f32.gmra.mrb[0].mxu0 %v506
    %v508 = vpop.f32.mrb[0].mxu0
    %v509 = vadd.f32 %v380, %v508
    %v510 = vpop.f32.mrb[0].mxu0
    %511 = vdwg.mxu0
    %512 = vmatprep.subr.mxu0 0.0
    %v513 = vand.u32 %v65, 4294901760
    %514 = vmatpush1.msra.mxu0 %v513
    %515 = vmatprep.subr.mxu0 0.0
    %v516 = vand.u32 %v66, 4294901760
    %517 = vmatpush1.msra.mxu0 %v516
    %518 = vmatprep.subr.mxu0 0.0
    %v519 = vand.u32 %v67, 4294901760
    %520 = vmatpush1.msra.mxu0 %v519
    %521 = vmatprep.subr.mxu0 0.0
    %v522 = vand.u32 %v68, 4294901760
    %523 = vmatpush1.msra.mxu0 %v522
    %524 = vmatprep.subr.mxu0 0.0
    %525 = vmatpush1.msra.mxu0 0.0
    %526 = vmatprep.subr.mxu0 0.0
    %527 = vmatpush1.msra.mxu0 0.0
    %528 = vmatprep.subr.mxu0 0.0
    %529 = vmatpush1.msra.mxu0 0.0
    %530 = vmatprep.subr.mxu0 0.0
    %531 = vmatpush1.msra.mxu0 0.0
    %532 = vmatprep.subr.mxu0 0.0
    %533 = vmatpush1.msra.mxu0 0.0
    %534 = vmatprep.subr.mxu0 0.0
    %535 = vmatpush1.msra.mxu0 0.0
    %536 = vmatprep.subr.mxu0 0.0
    %537 = vmatpush1.msra.mxu0 0.0
    %538 = vmatprep.subr.mxu0 0.0
    %539 = vmatpush1.msra.mxu0 0.0
    %540 = vmatprep.subr.mxu0 0.0
    %541 = vmatpush1.msra.mxu0 0.0
    %542 = vmatprep.subr.mxu0 0.0
    %543 = vmatpush1.msra.mxu0 0.0
    %544 = vmatprep.subr.mxu0 0.0
    %545 = vmatpush1.msra.mxu0 0.0
    %546 = vmatprep.subr.mxu0 0.0
    %547 = vmatpush1.msra.mxu0 0.0
    %548 = vmatprep.subr.mxu0 0.0
    %549 = vmatpush1.msra.mxu0 0.0
    %550 = vmatprep.subr.mxu0 0.0
    %551 = vmatpush1.msra.mxu0 0.0
    %552 = vmatprep.subr.mxu0 0.0
    %553 = vmatpush1.msra.mxu0 0.0
    %554 = vmatprep.subr.mxu0 0.0
    %555 = vmatpush1.msra.mxu0 0.0
    %556 = vmatprep.subr.mxu0 0.0
    %557 = vmatpush1.msra.mxu0 0.0
    %558 = vmatprep.subr.mxu0 0.0
    %559 = vmatpush1.msra.mxu0 0.0
    %560 = vmatprep.subr.mxu0 0.0
    %561 = vmatpush1.msra.mxu0 0.0
    %562 = vmatprep.subr.mxu0 0.0
    %563 = vmatpush1.msra.mxu0 0.0
    %564 = vmatprep.subr.mxu0 0.0
    %565 = vmatpush1.msra.mxu0 0.0
    %566 = vmatprep.subr.mxu0 0.0
    %567 = vmatpush1.msra.mxu0 0.0
    %568 = vmatprep.subr.mxu0 0.0
    %569 = vmatpush1.msra.mxu0 0.0
    %570 = vmatprep.subr.mxu0 0.0
    %571 = vmatpush1.msra.mxu0 0.0
    %572 = vmatprep.subr.mxu0 0.0
    %573 = vmatpush1.msra.mxu0 0.0
    %574 = vmatprep.subr.mxu0 0.0
    %575 = vmatpush1.msra.mxu0 0.0
    %576 = vmatprep.subr.mxu0 0.0
    %577 = vmatpush1.msra.mxu0 0.0
    %578 = vmatprep.subr.mxu0 0.0
    %579 = vmatpush1.msra.mxu0 0.0
    %580 = vmatprep.mubr.f32.mxu0 0.0
    %v581 = vand.u32 %v78, 4294901760
    %v582 = vsub.f32 %v78, %v581
    %v583 = vand.u32 %v582, 4294901760
    %584 = vmatmul.mubr.f32.gmra.mrb[0].mxu0 %v583
    %v585 = vpop.f32.mrb[0].mxu0
    %v586 = vadd.f32 %v460, %v585
    %v587 = vpop.f32.mrb[0].mxu0
    %588 = vmatprep.mubr.f32.mxu0 0.0
    %v589 = vand.u32 %v81, 4294901760
    %v590 = vsub.f32 %v81, %v589
    %v591 = vand.u32 %v590, 4294901760
    %592 = vmatmul.mubr.f32.gmra.mrb[0].mxu0 %v591
    %v593 = vpop.f32.mrb[0].mxu0
    %v594 = vadd.f32 %v467, %v593
    %v595 = vpop.f32.mrb[0].mxu0
    %596 = vmatprep.mubr.f32.mxu0 0.0
    %v597 = vand.u32 %v84, 4294901760
    %v598 = vsub.f32 %v84, %v597
    %v599 = vand.u32 %v598, 4294901760
    %600 = vmatmul.mubr.f32.gmra.mrb[0].mxu0 %v599
    %v601 = vpop.f32.mrb[0].mxu0
    %v602 = vadd.f32 %v474, %v601
    %v603 = vpop.f32.mrb[0].mxu0
    %604 = vmatprep.mubr.f32.mxu0 0.0
    %v605 = vand.u32 %v87, 4294901760
    %v606 = vsub.f32 %v87, %v605
    %v607 = vand.u32 %v606, 4294901760
    %608 = vmatmul.mubr.f32.gmra.mrb[0].mxu0 %v607
    %v609 = vpop.f32.mrb[0].mxu0
    %v610 = vadd.f32 %v481, %v609
    %v611 = vpop.f32.mrb[0].mxu0
    %612 = vmatprep.mubr.f32.mxu0 0.0
    %v613 = vand.u32 %v90, 4294901760
    %v614 = vsub.f32 %v90, %v613
    %v615 = vand.u32 %v614, 4294901760
    %616 = vmatmul.mubr.f32.gmra.mrb[0].mxu0 %v615
    %v617 = vpop.f32.mrb[0].mxu0
    %v618 = vadd.f32 %v488, %v617
    %v619 = vpop.f32.mrb[0].mxu0
    %620 = vmatprep.mubr.f32.mxu0 0.0
    %v621 = vand.u32 %v93, 4294901760
    %v622 = vsub.f32 %v93, %v621
    %v623 = vand.u32 %v622, 4294901760
    %624 = vmatmul.mubr.f32.gmra.mrb[0].mxu0 %v623
    %v625 = vpop.f32.mrb[0].mxu0
    %v626 = vadd.f32 %v495, %v625
    %v627 = vpop.f32.mrb[0].mxu0
    %628 = vmatprep.mubr.f32.mxu0 0.0
    %v629 = vand.u32 %v96, 4294901760
    %v630 = vsub.f32 %v96, %v629
    %v631 = vand.u32 %v630, 4294901760
    %632 = vmatmul.mubr.f32.gmra.mrb[0].mxu0 %v631
    %v633 = vpop.f32.mrb[0].mxu0
    %v634 = vadd.f32 %v502, %v633
    %v635 = vpop.f32.mrb[0].mxu0
    %636 = vmatprep.mubr.f32.mxu0 0.0
    %v637 = vand.u32 %v99, 4294901760
    %v638 = vsub.f32 %v99, %v637
    %v639 = vand.u32 %v638, 4294901760
    %640 = vmatmul.mubr.f32.gmra.mrb[0].mxu0 %v639
    %v641 = vpop.f32.mrb[0].mxu0
    %v642 = vadd.f32 %v509, %v641
    %v643 = vpop.f32.mrb[0].mxu0
    %644 = vdwg.mxu0
    %645 = vmatprep.subr.mxu0 0.0
    %v646 = vand.u32 %v65, 4294901760
    %v647 = vsub.f32 %v65, %v646
    %v648 = vand.u32 %v647, 4294901760
    %649 = vmatpush1.msra.mxu0 %v648
    %650 = vmatprep.subr.mxu0 0.0
    %v651 = vand.u32 %v66, 4294901760
    %v652 = vsub.f32 %v66, %v651
    %v653 = vand.u32 %v652, 4294901760
    %654 = vmatpush1.msra.mxu0 %v653
    %655 = vmatprep.subr.mxu0 0.0
    %v656 = vand.u32 %v67, 4294901760
    %v657 = vsub.f32 %v67, %v656
    %v658 = vand.u32 %v657, 4294901760
    %659 = vmatpush1.msra.mxu0 %v658
    %660 = vmatprep.subr.mxu0 0.0
    %v661 = vand.u32 %v68, 4294901760
    %v662 = vsub.f32 %v68, %v661
    %v663 = vand.u32 %v662, 4294901760
    %664 = vmatpush1.msra.mxu0 %v663
    %665 = vmatprep.subr.mxu0 0.0
    %666 = vmatpush1.msra.mxu0 0.0
    %667 = vmatprep.subr.mxu0 0.0
    %668 = vmatpush1.msra.mxu0 0.0
    %669 = vmatprep.subr.mxu0 0.0
    %670 = vmatpush1.msra.mxu0 0.0
    %671 = vmatprep.subr.mxu0 0.0
    %672 = vmatpush1.msra.mxu0 0.0
    %673 = vmatprep.subr.mxu0 0.0
    %674 = vmatpush1.msra.mxu0 0.0
    %675 = vmatprep.subr.mxu0 0.0
    %676 = vmatpush1.msra.mxu0 0.0
    %677 = vmatprep.subr.mxu0 0.0
    %678 = vmatpush1.msra.mxu0 0.0
    %679 = vmatprep.subr.mxu0 0.0
    %680 = vmatpush1.msra.mxu0 0.0
    %681 = vmatprep.subr.mxu0 0.0
    %682 = vmatpush1.msra.mxu0 0.0
    %683 = vmatprep.subr.mxu0 0.0
    %684 = vmatpush1.msra.mxu0 0.0
    %685 = vmatprep.subr.mxu0 0.0
    %686 = vmatpush1.msra.mxu0 0.0
    %687 = vmatprep.subr.mxu0 0.0
    %688 = vmatpush1.msra.mxu0 0.0
    %689 = vmatprep.subr.mxu0 0.0
    %690 = vmatpush1.msra.mxu0 0.0
    %691 = vmatprep.subr.mxu0 0.0
    %692 = vmatpush1.msra.mxu0 0.0
    %693 = vmatprep.subr.mxu0 0.0
    %694 = vmatpush1.msra.mxu0 0.0
    %695 = vmatprep.subr.mxu0 0.0
    %696 = vmatpush1.msra.mxu0 0.0
    %697 = vmatprep.subr.mxu0 0.0
    %698 = vmatpush1.msra.mxu0 0.0
    %699 = vmatprep.subr.mxu0 0.0
    %700 = vmatpush1.msra.mxu0 0.0
    %701 = vmatprep.subr.mxu0 0.0
    %702 = vmatpush1.msra.mxu0 0.0
    %703 = vmatprep.subr.mxu0 0.0
    %704 = vmatpush1.msra.mxu0 0.0
    %705 = vmatprep.subr.mxu0 0.0
    %706 = vmatpush1.msra.mxu0 0.0
    %707 = vmatprep.subr.mxu0 0.0
    %708 = vmatpush1.msra.mxu0 0.0
    %709 = vmatprep.subr.mxu0 0.0
    %710 = vmatpush1.msra.mxu0 0.0
    %711 = vmatprep.subr.mxu0 0.0
    %712 = vmatpush1.msra.mxu0 0.0
    %713 = vmatprep.subr.mxu0 0.0
    %714 = vmatpush1.msra.mxu0 0.0
    %715 = vmatprep.subr.mxu0 0.0
    %716 = vmatpush1.msra.mxu0 0.0
    %717 = vmatprep.subr.mxu0 0.0
    %718 = vmatpush1.msra.mxu0 0.0
    %719 = vmatprep.subr.mxu0 0.0
    %720 = vmatpush1.msra.mxu0 0.0
    %721 = vmatprep.mubr.f32.mxu0 0.0
    %v722 = vand.u32 %v78, 4294901760
    %723 = vmatmul.mubr.f32.gmra.mrb[0].mxu0 %v722
    %v724 = vpop.f32.mrb[0].mxu0
    %v725 = vadd.f32 %v586, %v724
    %v726 = vpop.f32.mrb[0].mxu0
    %727 = vmatprep.mubr.f32.mxu0 0.0
    %v728 = vand.u32 %v81, 4294901760
    %729 = vmatmul.mubr.f32.gmra.mrb[0].mxu0 %v728
    %v730 = vpop.f32.mrb[0].mxu0
    %v731 = vadd.f32 %v594, %v730
    %v732 = vpop.f32.mrb[0].mxu0
    %733 = vmatprep.mubr.f32.mxu0 0.0
    %v734 = vand.u32 %v84, 4294901760
    %735 = vmatmul.mubr.f32.gmra.mrb[0].mxu0 %v734
    %v736 = vpop.f32.mrb[0].mxu0
    %v737 = vadd.f32 %v602, %v736
    %v738 = vpop.f32.mrb[0].mxu0
    %739 = vmatprep.mubr.f32.mxu0 0.0
    %v740 = vand.u32 %v87, 4294901760
    %741 = vmatmul.mubr.f32.gmra.mrb[0].mxu0 %v740
    %v742 = vpop.f32.mrb[0].mxu0
    %v743 = vadd.f32 %v610, %v742
    %v744 = vpop.f32.mrb[0].mxu0
    %745 = vmatprep.mubr.f32.mxu0 0.0
    %v746 = vand.u32 %v90, 4294901760
    %747 = vmatmul.mubr.f32.gmra.mrb[0].mxu0 %v746
    %v748 = vpop.f32.mrb[0].mxu0
    %v749 = vadd.f32 %v618, %v748
    %v750 = vpop.f32.mrb[0].mxu0
    %751 = vmatprep.mubr.f32.mxu0 0.0
    %v752 = vand.u32 %v93, 4294901760
    %753 = vmatmul.mubr.f32.gmra.mrb[0].mxu0 %v752
    %v754 = vpop.f32.mrb[0].mxu0
    %v755 = vadd.f32 %v626, %v754
    %v756 = vpop.f32.mrb[0].mxu0
    %757 = vmatprep.mubr.f32.mxu0 0.0
    %v758 = vand.u32 %v96, 4294901760
    %759 = vmatmul.mubr.f32.gmra.mrb[0].mxu0 %v758
    %v760 = vpop.f32.mrb[0].mxu0
    %v761 = vadd.f32 %v634, %v760
    %v762 = vpop.f32.mrb[0].mxu0
    %763 = vmatprep.mubr.f32.mxu0 0.0
    %v764 = vand.u32 %v99, 4294901760
    %765 = vmatmul.mubr.f32.gmra.mrb[0].mxu0 %v764
    %v766 = vpop.f32.mrb[0].mxu0
    %v767 = vadd.f32 %v642, %v766
    %v768 = vpop.f32.mrb[0].mxu0
    %769 = vdwg.mxu0
    %770 = vmatprep.subr.mxu0 0.0
    %v771 = vand.u32 %v65, 4294901760
    %772 = vmatpush1.msra.mxu0 %v771
    %773 = vmatprep.subr.mxu0 0.0
    %v774 = vand.u32 %v66, 4294901760
    %775 = vmatpush1.msra.mxu0 %v774
    %776 = vmatprep.subr.mxu0 0.0
    %v777 = vand.u32 %v67, 4294901760
    %778 = vmatpush1.msra.mxu0 %v777
    %779 = vmatprep.subr.mxu0 0.0
    %v780 = vand.u32 %v68, 4294901760
    %781 = vmatpush1.msra.mxu0 %v780
    %782 = vmatprep.subr.mxu0 0.0
    %783 = vmatpush1.msra.mxu0 0.0
    %784 = vmatprep.subr.mxu0 0.0
    %785 = vmatpush1.msra.mxu0 0.0
    %786 = vmatprep.subr.mxu0 0.0
    %787 = vmatpush1.msra.mxu0 0.0
    %788 = vmatprep.subr.mxu0 0.0
    %789 = vmatpush1.msra.mxu0 0.0
    %790 = vmatprep.subr.mxu0 0.0
    %791 = vmatpush1.msra.mxu0 0.0
    %792 = vmatprep.subr.mxu0 0.0
    %793 = vmatpush1.msra.mxu0 0.0
    %794 = vmatprep.subr.mxu0 0.0
    %795 = vmatpush1.msra.mxu0 0.0
    %796 = vmatprep.subr.mxu0 0.0
    %797 = vmatpush1.msra.mxu0 0.0
    %798 = vmatprep.subr.mxu0 0.0
    %799 = vmatpush1.msra.mxu0 0.0
    %800 = vmatprep.subr.mxu0 0.0
    %801 = vmatpush1.msra.mxu0 0.0
    %802 = vmatprep.subr.mxu0 0.0
    %803 = vmatpush1.msra.mxu0 0.0
    %804 = vmatprep.subr.mxu0 0.0
    %805 = vmatpush1.msra.mxu0 0.0
    %806 = vmatprep.subr.mxu0 0.0
    %807 = vmatpush1.msra.mxu0 0.0
    %808 = vmatprep.subr.mxu0 0.0
    %809 = vmatpush1.msra.mxu0 0.0
    %810 = vmatprep.subr.mxu0 0.0
    %811 = vmatpush1.msra.mxu0 0.0
    %812 = vmatprep.subr.mxu0 0.0
    %813 = vmatpush1.msra.mxu0 0.0
    %814 = vmatprep.subr.mxu0 0.0
    %815 = vmatpush1.msra.mxu0 0.0
    %816 = vmatprep.subr.mxu0 0.0
    %817 = vmatpush1.msra.mxu0 0.0
    %818 = vmatprep.subr.mxu0 0.0
    %819 = vmatpush1.msra.mxu0 0.0
    %820 = vmatprep.subr.mxu0 0.0
    %821 = vmatpush1.msra.mxu0 0.0
    %822 = vmatprep.subr.mxu0 0.0
    %823 = vmatpush1.msra.mxu0 0.0
    %824 = vmatprep.subr.mxu0 0.0
    %825 = vmatpush1.msra.mxu0 0.0
    %826 = vmatprep.subr.mxu0 0.0
    %827 = vmatpush1.msra.mxu0 0.0
    %828 = vmatprep.subr.mxu0 0.0
    %829 = vmatpush1.msra.mxu0 0.0
    %830 = vmatprep.subr.mxu0 0.0
    %831 = vmatpush1.msra.mxu0 0.0
    %832 = vmatprep.subr.mxu0 0.0
    %833 = vmatpush1.msra.mxu0 0.0
    %834 = vmatprep.subr.mxu0 0.0
    %835 = vmatpush1.msra.mxu0 0.0
    %836 = vmatprep.subr.mxu0 0.0
    %837 = vmatpush1.msra.mxu0 0.0
    %838 = vmatprep.mubr.f32.mxu0 0.0
    %v839 = vand.u32 %v78, 4294901760
    %840 = vmatmul.mubr.f32.gmra.mrb[0].mxu0 %v839
    %v841 = vpop.f32.mrb[0].mxu0
    %v842 = vadd.f32 %v725, %v841
    %v843 = vpop.f32.mrb[0].mxu0
    %844 = vmatprep.mubr.f32.mxu0 0.0
    %v845 = vand.u32 %v81, 4294901760
    %846 = vmatmul.mubr.f32.gmra.mrb[0].mxu0 %v845
    %v847 = vpop.f32.mrb[0].mxu0
    %v848 = vadd.f32 %v731, %v847
    %v849 = vpop.f32.mrb[0].mxu0
    %850 = vmatprep.mubr.f32.mxu0 0.0
    %v851 = vand.u32 %v84, 4294901760
    %852 = vmatmul.mubr.f32.gmra.mrb[0].mxu0 %v851
    %v853 = vpop.f32.mrb[0].mxu0
    %v854 = vadd.f32 %v737, %v853
    %v855 = vpop.f32.mrb[0].mxu0
    %856 = vmatprep.mubr.f32.mxu0 0.0
    %v857 = vand.u32 %v87, 4294901760
    %858 = vmatmul.mubr.f32.gmra.mrb[0].mxu0 %v857
    %v859 = vpop.f32.mrb[0].mxu0
    %v860 = vadd.f32 %v743, %v859
    %v861 = vpop.f32.mrb[0].mxu0
    %862 = vmatprep.mubr.f32.mxu0 0.0
    %v863 = vand.u32 %v90, 4294901760
    %864 = vmatmul.mubr.f32.gmra.mrb[0].mxu0 %v863
    %v865 = vpop.f32.mrb[0].mxu0
    %v866 = vadd.f32 %v749, %v865
    %v867 = vpop.f32.mrb[0].mxu0
    %868 = vmatprep.mubr.f32.mxu0 0.0
    %v869 = vand.u32 %v93, 4294901760
    %870 = vmatmul.mubr.f32.gmra.mrb[0].mxu0 %v869
    %v871 = vpop.f32.mrb[0].mxu0
    %v872 = vadd.f32 %v755, %v871
    %v873 = vpop.f32.mrb[0].mxu0
    %874 = vmatprep.mubr.f32.mxu0 0.0
    %v875 = vand.u32 %v96, 4294901760
    %876 = vmatmul.mubr.f32.gmra.mrb[0].mxu0 %v875
    %v877 = vpop.f32.mrb[0].mxu0
    %v878 = vadd.f32 %v761, %v877
    %v879 = vpop.f32.mrb[0].mxu0
    %880 = vmatprep.mubr.f32.mxu0 0.0
    %v881 = vand.u32 %v99, 4294901760
    %882 = vmatmul.mubr.f32.gmra.mrb[0].mxu0 %v881
    %v883 = vpop.f32.mrb[0].mxu0
    %v884 = vadd.f32 %v767, %v883
    %v885 = vpop.f32.mrb[0].mxu0
    %886 = vdwg.mxu0
    %v887 = vtanh.pop %v842
    %v888 = vtanh.pop %v848
    %v889 = vtanh.pop %v854
    %v890 = vtanh.pop %v860
    %v891 = vtanh.pop %v866
    %v892 = vtanh.pop %v872
    %v893 = vtanh.pop %v878
    %v894 = vtanh.pop %v884
    %v895 = vld [vmem:[%s4] sm:$0x1]
    %v897 = vlaneseq
    %v898 = vshrl.u32 %v897, 7
    %v899 = vsub.s32 0, %v898
    %v900 = vrot.slane %v895, %v899
    %v902 = vmul.f32 %v887, %v900
    %v903 = vmul.f32 %v888, %v900
    %v904 = vmul.f32 %v889, %v900
    %v905 = vmul.f32 %v890, %v900
    %v906 = vmul.f32 %v891, %v900
    %v907 = vmul.f32 %v892, %v900
    %v908 = vmul.f32 %v893, %v900
    %v909 = vmul.f32 %v894, %v900
    %vm910 = vcmask 130048
    %v911 = vsel %vm910, %v902, 0.0
    %912 = vadd.xlane.f32.xlu0 %v911
    %v913 = vpop.xlane.xlu0 %912
    %v914 = vsel %vm910, %v903, 0.0
    %915 = vadd.xlane.f32.xlu0 %v914
    %v916 = vpop.xlane.xlu0 %915
    %v917 = vsel %vm910, %v904, 0.0
    %918 = vadd.xlane.f32.xlu0 %v917
    %v919 = vpop.xlane.xlu0 %918
    %v920 = vsel %vm910, %v905, 0.0
    %921 = vadd.xlane.f32.xlu0 %v920
    %v922 = vpop.xlane.xlu0 %921
    %v923 = vsel %vm910, %v906, 0.0
    %924 = vadd.xlane.f32.xlu0 %v923
    %v925 = vpop.xlane.xlu0 %924
    %v926 = vsel %vm910, %v907, 0.0
    %927 = vadd.xlane.f32.xlu0 %v926
    %v928 = vpop.xlane.xlu0 %927
    %v929 = vsel %vm910, %v908, 0.0
    %930 = vadd.xlane.f32.xlu0 %v929
    %v931 = vpop.xlane.xlu0 %930
    %v932 = vsel %vm910, %v909, 0.0
    %933 = vadd.xlane.f32.xlu0 %v932
    %v934 = vpop.xlane.xlu0 %933
    %v935 = vld [vmem:[#allocation2] sm:$0x1]
    %v937 = vlaneseq
    %v938 = vshrl.u32 %v937, 7
    %v939 = vsub.s32 0, %v938
    %v940 = vrot.slane %v935, %v939
    %941 = vset.pattern.permute.xlu0 0
    %942 = vperm.xlu0 %941, %v940
    %v943 = vpop.permute.xlu0 %942
    %v945 = vadd.f32 %v913, %v943
    %v946 = vadd.f32 %v916, %v943
    %v947 = vadd.f32 %v919, %v943
    %v948 = vadd.f32 %v922, %v943
    %v949 = vadd.f32 %v925, %v943
    %v950 = vadd.f32 %v928, %v943
    %v951 = vadd.f32 %v931, %v943
    %v952 = vadd.f32 %v934, %v943
    %v961 = vlaneseq
    %v962 = vand.u32 %v961, 127
    %v963 = vlaneseq
    %v964 = vshrl.u32 %v963, 7
    %v965 = vsub.s32 %v962, %v964
    %v966 = vrot.slane %v945, %v965
    %v967 = vlaneseq
    %v968 = vshrl.u32 %v967, 7
    %v969 = vsub.s32 %v962, %v968
    %v970 = vrot.slane %v946, %v969
    %v971 = vlaneseq
    %v972 = vshrl.u32 %v971, 7
    %v973 = vsub.s32 %v962, %v972
    %v974 = vrot.slane %v947, %v973
    %v975 = vlaneseq
    %v976 = vshrl.u32 %v975, 7
    %v977 = vsub.s32 %v962, %v976
    %v978 = vrot.slane %v948, %v977
    %v979 = vlaneseq
    %v980 = vshrl.u32 %v979, 7
    %v981 = vsub.s32 %v962, %v980
    %v982 = vrot.slane %v949, %v981
    %v983 = vlaneseq
    %v984 = vshrl.u32 %v983, 7
    %v985 = vsub.s32 %v962, %v984
    %v986 = vrot.slane %v950, %v985
    %v987 = vlaneseq
    %v988 = vshrl.u32 %v987, 7
    %v989 = vsub.s32 %v962, %v988
    %v990 = vrot.slane %v951, %v989
    %v991 = vlaneseq
    %v992 = vshrl.u32 %v991, 7
    %v993 = vsub.s32 %v962, %v992
    %v994 = vrot.slane %v952, %v993
    %vm995 = vcmask 1041409
    %v996 = vsel %vm995, %v970, %v966
    %vm997 = vcmask 1042434
    %v998 = vsel %vm997, %v974, %v996
    %vm999 = vcmask 1043459
    %v1000 = vsel %vm999, %v978, %v998
    %vm1001 = vcmask 1044484
    %v1002 = vsel %vm1001, %v982, %v1000
    %vm1003 = vcmask 1045509
    %v1004 = vsel %vm1003, %v986, %v1002
    %vm1005 = vcmask 1046534
    %v1006 = vsel %vm1005, %v990, %v1004
    %vm1007 = vcmask 1047559
    %v1008 = vsel %vm1007, %v994, %v1006
    %vm1010 = vcmask 64512
    %1011 = vst.msk [vmem:[#allocation9] sm:$0xff] %vm1010, %v1008
    %v1012 = vsel %vm1010, %v1008, -inf
    %1013 = vmax.xlane.f32.xlu0 %v1012
    %v1014 = vpop.xlane.xlu0 %1013
    %v1016 = vlaneseq
    %v1017 = vshrl.u32 %v1016, 7
    %v1018 = vsub.s32 0, %v1017
    %v1019 = vrot.slane %v1014, %v1018
    %v1020 = vlaneseq
    %v1021 = vshrl.u32 %v1020, 7
    %v1022 = vsub.s32 1, %v1021
    %v1023 = vrot.slane %v1014, %v1022
    %v1024 = vlaneseq
    %v1025 = vshrl.u32 %v1024, 7
    %v1026 = vsub.s32 2, %v1025
    %v1027 = vrot.slane %v1014, %v1026
    %v1028 = vlaneseq
    %v1029 = vshrl.u32 %v1028, 7
    %v1030 = vsub.s32 3, %v1029
    %v1031 = vrot.slane %v1014, %v1030
    %v1032 = vlaneseq
    %v1033 = vshrl.u32 %v1032, 7
    %v1034 = vsub.s32 4, %v1033
    %v1035 = vrot.slane %v1014, %v1034
    %v1036 = vlaneseq
    %v1037 = vshrl.u32 %v1036, 7
    %v1038 = vsub.s32 5, %v1037
    %v1039 = vrot.slane %v1014, %v1038
    %v1040 = vlaneseq
    %v1041 = vshrl.u32 %v1040, 7
    %v1042 = vsub.s32 6, %v1041
    %v1043 = vrot.slane %v1014, %v1042
    %v1044 = vlaneseq
    %v1045 = vshrl.u32 %v1044, 7
    %v1046 = vsub.s32 7, %v1045
    %v1047 = vrot.slane %v1014, %v1046
    %v1056 = vsub.f32 %v945, %v1019
    %v1057 = vsub.f32 %v946, %v1023
    %v1058 = vsub.f32 %v947, %v1027
    %v1059 = vsub.f32 %v948, %v1031
    %v1060 = vsub.f32 %v949, %v1035
    %v1061 = vsub.f32 %v950, %v1039
    %v1062 = vsub.f32 %v951, %v1043
    %v1063 = vsub.f32 %v952, %v1047
    %v1064 = vmul.f32 %v1056, 1.442695
    %v1065 = vpow.pop %v1064
    %v1066 = vmul.f32 %v1057, 1.442695
    %v1067 = vpow.pop %v1066
    %v1068 = vmul.f32 %v1058, 1.442695
    %v1069 = vpow.pop %v1068
    %v1070 = vmul.f32 %v1059, 1.442695
    %v1071 = vpow.pop %v1070
    %v1072 = vmul.f32 %v1060, 1.442695
    %v1073 = vpow.pop %v1072
    %v1074 = vmul.f32 %v1061, 1.442695
    %v1075 = vpow.pop %v1074
    %v1076 = vmul.f32 %v1062, 1.442695
    %v1077 = vpow.pop %v1076
    %v1078 = vmul.f32 %v1063, 1.442695
    %v1079 = vpow.pop %v1078
    %1088 = vset.pattern.permute.xlu0 0
    %1089 = vperm.xlu0 %1088, %v1065
    %v1090 = vpop.permute.xlu0 %1089
    %1091 = vset.pattern.permute.xlu0 0
    %1092 = vperm.xlu0 %1091, %v1067
    %v1093 = vpop.permute.xlu0 %1092
    %1094 = vset.pattern.permute.xlu0 0
    %1095 = vperm.xlu0 %1094, %v1069
    %v1096 = vpop.permute.xlu0 %1095
    %1097 = vset.pattern.permute.xlu0 0
    %1098 = vperm.xlu0 %1097, %v1071
    %v1099 = vpop.permute.xlu0 %1098
    %1100 = vset.pattern.permute.xlu0 0
    %1101 = vperm.xlu0 %1100, %v1073
    %v1102 = vpop.permute.xlu0 %1101
    %1103 = vset.pattern.permute.xlu0 0
    %1104 = vperm.xlu0 %1103, %v1075
    %v1105 = vpop.permute.xlu0 %1104
    %1106 = vset.pattern.permute.xlu0 0
    %1107 = vperm.xlu0 %1106, %v1077
    %v1108 = vpop.permute.xlu0 %1107
    %1109 = vset.pattern.permute.xlu0 0
    %1110 = vperm.xlu0 %1109, %v1079
    %v1111 = vpop.permute.xlu0 %1110
    %v1112 = vlaneseq
    %v1113 = vshrl.u32 %v1112, 7
    %v1114 = vsub.s32 %v962, %v1113
    %v1115 = vrot.slane %v1090, %v1114
    %v1116 = vlaneseq
    %v1117 = vshrl.u32 %v1116, 7
    %v1118 = vsub.s32 %v962, %v1117
    %v1119 = vrot.slane %v1093, %v1118
    %v1120 = vlaneseq
    %v1121 = vshrl.u32 %v1120, 7
    %v1122 = vsub.s32 %v962, %v1121
    %v1123 = vrot.slane %v1096, %v1122
    %v1124 = vlaneseq
    %v1125 = vshrl.u32 %v1124, 7
    %v1126 = vsub.s32 %v962, %v1125
    %v1127 = vrot.slane %v1099, %v1126
    %v1128 = vlaneseq
    %v1129 = vshrl.u32 %v1128, 7
    %v1130 = vsub.s32 %v962, %v1129
    %v1131 = vrot.slane %v1102, %v1130
    %v1132 = vlaneseq
    %v1133 = vshrl.u32 %v1132, 7
    %v1134 = vsub.s32 %v962, %v1133
    %v1135 = vrot.slane %v1105, %v1134
    %v1136 = vlaneseq
    %v1137 = vshrl.u32 %v1136, 7
    %v1138 = vsub.s32 %v962, %v1137
    %v1139 = vrot.slane %v1108, %v1138
    %v1140 = vlaneseq
    %v1141 = vshrl.u32 %v1140, 7
    %v1142 = vsub.s32 %v962, %v1141
    %v1143 = vrot.slane %v1111, %v1142
    %v1144 = vsel %vm995, %v1119, %v1115
    %v1145 = vsel %vm997, %v1123, %v1144
    %v1146 = vsel %vm999, %v1127, %v1145
    %v1147 = vsel %vm1001, %v1131, %v1146
    %v1148 = vsel %vm1003, %v1135, %v1147
    %v1149 = vsel %vm1005, %v1139, %v1148
    %v1150 = vsel %vm1007, %v1143, %v1149
    %v1152 = vsel %vm1010, %v1150, 0.0
    %1153 = vadd.xlane.f32.xlu0 %v1152
    %v1154 = vpop.xlane.xlu0 %1153
    %v1156 = vlaneseq
    %v1157 = vshrl.u32 %v1156, 7
    %v1158 = vsub.s32 0, %v1157
    %v1159 = vrot.slane %v1154, %v1158
    %v1160 = vlaneseq
    %v1161 = vshrl.u32 %v1160, 7
    %v1162 = vsub.s32 1, %v1161
    %v1163 = vrot.slane %v1154, %v1162
    %v1164 = vlaneseq
    %v1165 = vshrl.u32 %v1164, 7
    %v1166 = vsub.s32 2, %v1165
    %v1167 = vrot.slane %v1154, %v1166
    %v1168 = vlaneseq
    %v1169 = vshrl.u32 %v1168, 7
    %v1170 = vsub.s32 3, %v1169
    %v1171 = vrot.slane %v1154, %v1170
    %v1172 = vlaneseq
    %v1173 = vshrl.u32 %v1172, 7
    %v1174 = vsub.s32 4, %v1173
    %v1175 = vrot.slane %v1154, %v1174
    %v1176 = vlaneseq
    %v1177 = vshrl.u32 %v1176, 7
    %v1178 = vsub.s32 5, %v1177
    %v1179 = vrot.slane %v1154, %v1178
    %v1180 = vlaneseq
    %v1181 = vshrl.u32 %v1180, 7
    %v1182 = vsub.s32 6, %v1181
    %v1183 = vrot.slane %v1154, %v1182
    %v1184 = vlaneseq
    %v1185 = vshrl.u32 %v1184, 7
    %v1186 = vsub.s32 7, %v1185
    %v1187 = vrot.slane %v1154, %v1186
    %v1196 = vrcp.pop %v1159
    %v1197 = vmul.f32 %v1065, %v1196
    %v1198 = vrcp.pop %v1163
    %v1199 = vmul.f32 %v1067, %v1198
    %v1200 = vrcp.pop %v1167
    %v1201 = vmul.f32 %v1069, %v1200
    %v1202 = vrcp.pop %v1171
    %v1203 = vmul.f32 %v1071, %v1202
    %v1204 = vrcp.pop %v1175
    %v1205 = vmul.f32 %v1073, %v1204
    %v1206 = vrcp.pop %v1179
    %v1207 = vmul.f32 %v1075, %v1206
    %v1208 = vrcp.pop %v1183
    %v1209 = vmul.f32 %v1077, %v1208
    %v1210 = vrcp.pop %v1187
    %v1211 = vmul.f32 %v1079, %v1210
    %v1212 = vld [vmem:[#allocation6] sm:$0xff]
    %v1213 = vld [vmem:[#allocation6 + $0x8] sm:$0xff]
    %v1214 = vld [vmem:[#allocation6 + $0x10] sm:$0xff]
    %v1215 = vld [vmem:[#allocation6 + $0x18] sm:$0xff]
    %v1216 = vld [vmem:[#allocation6 + $0x20] sm:$0xff]
    %v1217 = vld [vmem:[#allocation6 + $0x28] sm:$0xff]
    %v1218 = vld [vmem:[#allocation6 + $0x30] sm:$0xff]
    %v1219 = vld [vmem:[#allocation6 + $0x38] sm:$0xff]
    %1221 = vset.pattern.permute.xlu0 0
    %1222 = vperm.xlu0 %1221, %v1197
    %v1223 = vpop.permute.xlu0 %1222
    %1226 = vset.pattern.permute.xlu0 0
    %1227 = vperm.xlu0 %1226, %v1199
    %v1228 = vpop.permute.xlu0 %1227
    %1231 = vset.pattern.permute.xlu0 0
    %1232 = vperm.xlu0 %1231, %v1201
    %v1233 = vpop.permute.xlu0 %1232
    %1236 = vset.pattern.permute.xlu0 0
    %1237 = vperm.xlu0 %1236, %v1203
    %v1238 = vpop.permute.xlu0 %1237
    %1241 = vset.pattern.permute.xlu0 0
    %1242 = vperm.xlu0 %1241, %v1205
    %v1243 = vpop.permute.xlu0 %1242
    %1246 = vset.pattern.permute.xlu0 0
    %1247 = vperm.xlu0 %1246, %v1207
    %v1248 = vpop.permute.xlu0 %1247
    %1251 = vset.pattern.permute.xlu0 0
    %1252 = vperm.xlu0 %1251, %v1209
    %v1253 = vpop.permute.xlu0 %1252
    %1256 = vset.pattern.permute.xlu0 0
    %1257 = vperm.xlu0 %1256, %v1211
    %v1258 = vpop.permute.xlu0 %1257
    %v1260 = vmul.f32 %v1223, %v1212
    %v1261 = vmul.f32 %v1228, %v1213
    %v1262 = vmul.f32 %v1233, %v1214
    %v1263 = vmul.f32 %v1238, %v1215
    %v1264 = vmul.f32 %v1243, %v1216
    %v1265 = vmul.f32 %v1248, %v1217
    %v1266 = vmul.f32 %v1253, %v1218
    %v1267 = vmul.f32 %v1258, %v1219
    %v1268 = vsel %vm76, %v1260, 0.0
    %v1269 = vrot.slane %v1268, 4
    %v1270 = vadd.f32 %v1268, %v1269
    %v1271 = vrot.slane %v1270, 2
    %v1272 = vadd.f32 %v1270, %v1271
    %v1273 = vrot.slane %v1272, 1
    %v1274 = vadd.f32 %v1272, %v1273
    %v1275 = vsel %vm76, %v1261, 0.0
    %v1276 = vrot.slane %v1275, 4
    %v1277 = vadd.f32 %v1275, %v1276
    %v1278 = vrot.slane %v1277, 2
    %v1279 = vadd.f32 %v1277, %v1278
    %v1280 = vrot.slane %v1279, 1
    %v1281 = vadd.f32 %v1279, %v1280
    %v1282 = vsel %vm76, %v1262, 0.0
    %v1283 = vrot.slane %v1282, 4
    %v1284 = vadd.f32 %v1282, %v1283
    %v1285 = vrot.slane %v1284, 2
    %v1286 = vadd.f32 %v1284, %v1285
    %v1287 = vrot.slane %v1286, 1
    %v1288 = vadd.f32 %v1286, %v1287
    %v1289 = vsel %vm76, %v1263, 0.0
    %v1290 = vrot.slane %v1289, 4
    %v1291 = vadd.f32 %v1289, %v1290
    %v1292 = vrot.slane %v1291, 2
    %v1293 = vadd.f32 %v1291, %v1292
    %v1294 = vrot.slane %v1293, 1
    %v1295 = vadd.f32 %v1293, %v1294
    %v1296 = vsel %vm76, %v1264, 0.0
    %v1297 = vrot.slane %v1296, 4
    %v1298 = vadd.f32 %v1296, %v1297
    %v1299 = vrot.slane %v1298, 2
    %v1300 = vadd.f32 %v1298, %v1299
    %v1301 = vrot.slane %v1300, 1
    %v1302 = vadd.f32 %v1300, %v1301
    %v1303 = vsel %vm76, %v1265, 0.0
    %v1304 = vrot.slane %v1303, 4
    %v1305 = vadd.f32 %v1303, %v1304
    %v1306 = vrot.slane %v1305, 2
    %v1307 = vadd.f32 %v1305, %v1306
    %v1308 = vrot.slane %v1307, 1
    %v1309 = vadd.f32 %v1307, %v1308
    %v1310 = vsel %vm76, %v1266, 0.0
    %v1311 = vrot.slane %v1310, 4
    %v1312 = vadd.f32 %v1310, %v1311
    %v1313 = vrot.slane %v1312, 2
    %v1314 = vadd.f32 %v1312, %v1313
    %v1315 = vrot.slane %v1314, 1
    %v1316 = vadd.f32 %v1314, %v1315
    %v1317 = vsel %vm76, %v1267, 0.0
    %v1318 = vrot.slane %v1317, 4
    %v1319 = vadd.f32 %v1317, %v1318
    %v1320 = vrot.slane %v1319, 2
    %v1321 = vadd.f32 %v1319, %v1320
    %v1322 = vrot.slane %v1321, 1
    %v1323 = vadd.f32 %v1321, %v1322
    %v1332 = vsel %vm995, %v1281, %v1274
    %v1333 = vsel %vm997, %v1288, %v1332
    %v1334 = vsel %vm999, %v1295, %v1333
    %v1335 = vsel %vm1001, %v1302, %v1334
    %v1336 = vsel %vm1003, %v1309, %v1335
    %v1337 = vsel %vm1005, %v1316, %v1336
    %v1338 = vsel %vm1007, %v1323, %v1337
    %1340 = vst.msk [vmem:[#allocation8] sm:$0xff] %vm76, %v1338
    // Predicated region
    $region34: #{tpu_custom_call.1} parent=1 // pred_check
      _
    $region35: #{tpu_custom_call.1} parent=1 // pred_check_branch
      %1342 = sbr.rel (0) target = $region37
    $region36: #{tpu_custom_call.1} parent=1 // pred_region
      %s1344 = ssub.s32 128, 128
      %1345 = vsyncadd [#allocation5], %s1344
      %s1347 = sshll.u32 [#allocation8], 4
      %s1348 = int_to_ptr.vmem [resolvable:$true] %s1347
      %1350 = dma.vmem_to_hbm [thread:$0]  %s1348, 128, %s6, [#allocation5]
    $region37: #{tpu_custom_call.1} parent=1 // pred_fallthru
      _
    // Predicated region
    $region38: #{tpu_custom_call.1} parent=1 // pred_check
      _
    $region39: #{tpu_custom_call.1} parent=1 // pred_check_branch
      %1352 = sbr.rel (0) target = $region41
    $region40: #{tpu_custom_call.1} parent=1 // pred_region
      %s1354 = ssub.s32 128, 128
      %1355 = vsyncadd [#allocation10], %s1354
      %s1357 = sshll.u32 [#allocation9], 4
      %s1358 = int_to_ptr.vmem [resolvable:$true] %s1357
      %1360 = dma.vmem_to_hbm [thread:$0]  %s1358, 128, %s7, [#allocation10]
    $region41: #{tpu_custom_call.1} parent=1 // pred_fallthru
      _
    // Predicated region
    $region42: #{tpu_custom_call.1} parent=1 // pred_check
      _
    $region43: #{tpu_custom_call.1} parent=1 // pred_check_branch
      %1362 = sbr.rel (0) target = $region45
    $region44: #{tpu_custom_call.1} parent=1 // pred_region
      %1363 = dma.done [#allocation5], 128
    $region45: #{tpu_custom_call.1} parent=1 // pred_fallthru
      _
    // Predicated region
    $region46: #{tpu_custom_call.1} parent=1 // pred_check
      _
    $region47: #{tpu_custom_call.1} parent=1 // pred_check_branch
      %1365 = sbr.rel (0) target = $region49
    $region48: #{tpu_custom_call.1} parent=1 // pred_region
      %1366 = dma.done [#allocation10], 128
    $region49: #{tpu_custom_call.1} parent=1 // pred_fallthru
      _
    %1367 = vsyncpa [#allocation4], 1
    %1368 = vsyncpa [#allocation7], 1
    %1369 = vsyncpa [#allocation5], 1
    %1370 = vsyncpa [#allocation10], 1

// kernel: tpu_custom_call.1
$region0: #{tpu_custom_call.1}
  #allocation0 [shape = 'u32[]', space=smem, size = 0x4, offset = 0x4, fixed_abs, tag = 'smem constant byte address 0x4 - core index']
  #allocation1 [shape = 'u32[144,128]{1,0:T(1,128)}', space=vmem, size = 0x12000, scoped, tag = 'internal scratch']
  #allocation2 [shape = 'f32[1,1]{1,0:T(1,128)S(1)}', space=vmem, size = 0x200, scoped, tag = 'scoped memory for tpu_custom_call.1']
  %s0 = inlined_call_operand.hbm [shape: f32[8,8,32], index: 0, kind: input, shape index: {}]
  %s1 = inlined_call_operand.hbm [shape: f32[8,8,32], index: 1, kind: input, shape index: {}]
  %s2 = inlined_call_operand.vmem [shape: f32[32,16], index: 2, kind: input, shape index: {}]
  %s3 = inlined_call_operand.vmem [shape: f32[1,16], index: 3, kind: input, shape index: {}]
  %s4 = inlined_call_operand.vmem [shape: f32[1,16], index: 4, kind: input, shape index: {}]
  %s5 = inlined_call_operand.<no memory space> [shape: f32[1,1], index: 5, kind: input, shape index: {}]
  %s6 = inlined_call_operand.hbm [shape: f32[8,32], index: 6, kind: output, shape index: {0}]
  %s7 = inlined_call_operand.hbm [shape: f32[8,8], index: 7, kind: output, shape index: {1}]
  %8 = xla_tuple %s6, %s7
  %s9 = sld [smem:[#allocation0]]
  $region50: #{tpu_custom_call.1} parent=0
    _
  %s11 = ssub.s32 1, %s9
  %s12 = scalar_select 0, %s11, %s9
  %v13 = vstv %s5
  %14 = vst [vmem:[#allocation2] sm:$0x1] %v13
  $region1: #{tpu_custom_call.1} parent=0
    #allocation3 [shape = 'u8[32768]{0}', space=vmem, size = 0x8000, scoped, tag = 'input window, operand 0, single buffered']
    #allocation4 [shape = 's32[1]{0}', space=sflag, size = 0x4, scoped, tag = 'scoped memory for tpu_custom_call.1']
    #allocation5 [shape = 's32[1]{0}', space=sflag, size = 0x4, scoped, tag = 'scoped memory for tpu_custom_call.1']
    #allocation6 [shape = 'u8[32768]{0}', space=vmem, size = 0x8000, scoped, tag = 'input window, operand 1, single buffered']
    #allocation7 [shape = 's32[1]{0}', space=sflag, size = 0x4, scoped, tag = 'scoped memory for tpu_custom_call.1']
    #allocation8 [shape = 'u8[4096]{0}', space=vmem, size = 0x1000, scoped, tag = 'output window, operand 0, single buffered']
    #allocation9 [shape = 'u8[4096]{0}', space=vmem, size = 0x1000, scoped, tag = 'output window, operand 1, single buffered']
    #allocation10 [shape = 's32[1]{0}', space=sflag, size = 0x4, scoped, tag = 'scoped memory for tpu_custom_call.1']
    %15 = vsyncpa [#allocation4], 0
    %16 = vsyncpa [#allocation7], 0
    %17 = vsyncpa [#allocation5], 0
    %18 = vsyncpa [#allocation10], 0
    // Predicated region
    $region2: #{tpu_custom_call.1} parent=1 // pred_check
      _
    $region3: #{tpu_custom_call.1} parent=1 // pred_check_branch
      %20 = sbr.rel (0) target = $region5
    $region4: #{tpu_custom_call.1} parent=1 // pred_region
      %s22 = ssub.s32 1024, 1024
      %23 = vsyncadd [#allocation4], %s22
      %s24 = sshll.u32 [#allocation3], 4
      %s25 = int_to_ptr.vmem [resolvable:$true] %s24
      %30 = dma.hbm_to_vmem [thread:$0]  %s0, 1024, %s25, [#allocation4], 128, 128, 8
    $region5: #{tpu_custom_call.1} parent=1 // pred_fallthru
      _
    // Predicated region
    $region6: #{tpu_custom_call.1} parent=1 // pred_check
      _
    $region7: #{tpu_custom_call.1} parent=1 // pred_check_branch
      %32 = sbr.rel (0) target = $region9
    $region8: #{tpu_custom_call.1} parent=1 // pred_region
      %s34 = ssub.s32 1024, 1024
      %35 = vsyncadd [#allocation7], %s34
      %s36 = sshll.u32 [#allocation6], 4
      %s37 = int_to_ptr.vmem [resolvable:$true] %s36
      %42 = dma.hbm_to_vmem [thread:$0]  %s1, 1024, %s37, [#allocation7], 128, 128, 8
    $region9: #{tpu_custom_call.1} parent=1 // pred_fallthru
      _
    // Predicated region
    $region10: #{tpu_custom_call.1} parent=1 // pred_check
      _
    $region11: #{tpu_custom_call.1} parent=1 // pred_check_branch
      %44 = sbr.rel (0) target = $region13
    $region12: #{tpu_custom_call.1} parent=1 // pred_region
      _
    $region13: #{tpu_custom_call.1} parent=1 // pred_fallthru
      _
    // Predicated region
    $region14: #{tpu_custom_call.1} parent=1 // pred_check
      _
    $region15: #{tpu_custom_call.1} parent=1 // pred_check_branch
      %46 = sbr.rel (0) target = $region17
    $region16: #{tpu_custom_call.1} parent=1 // pred_region
      _
    $region17: #{tpu_custom_call.1} parent=1 // pred_fallthru
      _
    // Predicated region
    $region18: #{tpu_custom_call.1} parent=1 // pred_check
      _
    $region19: #{tpu_custom_call.1} parent=1 // pred_check_branch
      %48 = sbr.rel (0) target = $region21
    $region20: #{tpu_custom_call.1} parent=1 // pred_region
      _
    $region21: #{tpu_custom_call.1} parent=1 // pred_fallthru
      _
    // Predicated region
    $region22: #{tpu_custom_call.1} parent=1 // pred_check
      _
    $region23: #{tpu_custom_call.1} parent=1 // pred_check_branch
      %50 = sbr.rel (0) target = $region25
    $region24: #{tpu_custom_call.1} parent=1 // pred_region
      _
    $region25: #{tpu_custom_call.1} parent=1 // pred_fallthru
      _
    // Predicated region
    $region26: #{tpu_custom_call.1} parent=1 // pred_check
      _
    $region27: #{tpu_custom_call.1} parent=1 // pred_check_branch
      %52 = sbr.rel (0) target = $region29
    $region28: #{tpu_custom_call.1} parent=1 // pred_region
      %53 = dma.done [#allocation4], 1024
    $region29: #{tpu_custom_call.1} parent=1 // pred_fallthru
      _
    // Predicated region
    $region30: #{tpu_custom_call.1} parent=1 // pred_check
      _
    $region31: #{tpu_custom_call.1} parent=1 // pred_check_branch
      %55 = sbr.rel (0) target = $region33
    $region32: #{tpu_custom_call.1} parent=1 // pred_region
      %56 = dma.done [#allocation7], 1024
    $region33: #{tpu_custom_call.1} parent=1 // pred_fallthru
      _
    %v57 = vld [vmem:[#allocation3] sm:$0xff]
    %v58 = vld [vmem:[#allocation3 + $0x8] sm:$0xff]
    %v59 = vld [vmem:[#allocation3 + $0x10] sm:$0xff]
    %v60 = vld [vmem:[#allocation3 + $0x18] sm:$0xff]
    %v61 = vld [vmem:[#allocation3 + $0x20] sm:$0xff]
    %v62 = vld [vmem:[#allocation3 + $0x28] sm:$0xff]
    %v63 = vld [vmem:[#allocation3 + $0x30] sm:$0xff]
    %v64 = vld [vmem:[#allocation3 + $0x38] sm:$0xff]
    %v65 = vld [vmem:[%s2] sm:$0xff]
    %v66 = vld [vmem:[%s2 + $0x8] sm:$0xff]
    %v67 = vld [vmem:[%s2 + $0x10] sm:$0xff]
    %v68 = vld [vmem:[%s2 + $0x18] sm:$0xff]
    %v69 = vld [vmem:[%s3] sm:$0x1]
    %v71 = vlaneseq
    %v72 = vshrl.u32 %v71, 7
    %v73 = vsub.s32 0, %v72
    %v74 = vrot.slane %v69, %v73
    %vm76 = vcmask 261120
    %v78 = vsel %vm76, %v57, 0
    %v81 = vsel %vm76, %v58, 0
    %v84 = vsel %vm76, %v59, 0
    %v87 = vsel %vm76, %v60, 0
    %v90 = vsel %vm76, %v61, 0
    %v93 = vsel %vm76, %v62, 0
    %v96 = vsel %vm76, %v63, 0
    %v99 = vsel %vm76, %v64, 0
    %101 = vmatprep.subr.mxu0 0.0
    %v102 = vand.u32 %v65, 4294901760
    %103 = vmatpush1.msra.mxu0 %v102
    %104 = vmatprep.subr.mxu0 0.0
    %v105 = vand.u32 %v66, 4294901760
    %106 = vmatpush1.msra.mxu0 %v105
    %107 = vmatprep.subr.mxu0 0.0
    %v108 = vand.u32 %v67, 4294901760
    %109 = vmatpush1.msra.mxu0 %v108
    %110 = vmatprep.subr.mxu0 0.0
    %v111 = vand.u32 %v68, 4294901760
    %112 = vmatpush1.msra.mxu0 %v111
    %113 = vmatprep.subr.mxu0 0.0
    %114 = vmatpush1.msra.mxu0 0.0
    %115 = vmatprep.subr.mxu0 0.0
    %116 = vmatpush1.msra.mxu0 0.0
    %117 = vmatprep.subr.mxu0 0.0
    %118 = vmatpush1.msra.mxu0 0.0
    %119 = vmatprep.subr.mxu0 0.0
    %120 = vmatpush1.msra.mxu0 0.0
    %121 = vmatprep.subr.mxu0 0.0
    %122 = vmatpush1.msra.mxu0 0.0
    %123 = vmatprep.subr.mxu0 0.0
    %124 = vmatpush1.msra.mxu0 0.0
    %125 = vmatprep.subr.mxu0 0.0
    %126 = vmatpush1.msra.mxu0 0.0
    %127 = vmatprep.subr.mxu0 0.0
    %128 = vmatpush1.msra.mxu0 0.0
    %129 = vmatprep.subr.mxu0 0.0
    %130 = vmatpush1.msra.mxu0 0.0
    %131 = vmatprep.subr.mxu0 0.0
    %132 = vmatpush1.msra.mxu0 0.0
    %133 = vmatprep.subr.mxu0 0.0
    %134 = vmatpush1.msra.mxu0 0.0
    %135 = vmatprep.subr.mxu0 0.0
    %136 = vmatpush1.msra.mxu0 0.0
    %137 = vmatprep.subr.mxu0 0.0
    %138 = vmatpush1.msra.mxu0 0.0
    %139 = vmatprep.subr.mxu0 0.0
    %140 = vmatpush1.msra.mxu0 0.0
    %141 = vmatprep.subr.mxu0 0.0
    %142 = vmatpush1.msra.mxu0 0.0
    %143 = vmatprep.subr.mxu0 0.0
    %144 = vmatpush1.msra.mxu0 0.0
    %145 = vmatprep.subr.mxu0 0.0
    %146 = vmatpush1.msra.mxu0 0.0
    %147 = vmatprep.subr.mxu0 0.0
    %148 = vmatpush1.msra.mxu0 0.0
    %149 = vmatprep.subr.mxu0 0.0
    %150 = vmatpush1.msra.mxu0 0.0
    %151 = vmatprep.subr.mxu0 0.0
    %152 = vmatpush1.msra.mxu0 0.0
    %153 = vmatprep.subr.mxu0 0.0
    %154 = vmatpush1.msra.mxu0 0.0
    %155 = vmatprep.subr.mxu0 0.0
    %156 = vmatpush1.msra.mxu0 0.0
    %157 = vmatprep.subr.mxu0 0.0
    %158 = vmatpush1.msra.mxu0 0.0
    %159 = vmatprep.subr.mxu0 0.0
    %160 = vmatpush1.msra.mxu0 0.0
    %161 = vmatprep.subr.mxu0 0.0
    %162 = vmatpush1.msra.mxu0 0.0
    %163 = vmatprep.subr.mxu0 0.0
    %164 = vmatpush1.msra.mxu0 0.0
    %165 = vmatprep.subr.mxu0 0.0
    %166 = vmatpush1.msra.mxu0 0.0
    %167 = vmatprep.subr.mxu0 0.0
    %168 = vmatpush1.msra.mxu0 0.0
    %169 = vmatprep.mubr.f32.mxu0 0.0
    %v170 = vand.u32 %v78, 4294901760
    %v171 = vsub.f32 %v78, %v170
    %v172 = vand.u32 %v171, 4294901760
    %v173 = vsub.f32 %v171, %v172
    %v174 = vand.u32 %v173, 4294901760
    %175 = vmatmul.mubr.f32.gmra.mrb[0].mxu0 %v174
    %v176 = vpop.f32.mrb[0].mxu0
    %v177 = vadd.f32 %v74, %v176
    %v178 = vpop.f32.mrb[0].mxu0
    %179 = vmatprep.mubr.f32.mxu0 0.0
    %v180 = vand.u32 %v81, 4294901760
    %v181 = vsub.f32 %v81, %v180
    %v182 = vand.u32 %v181, 4294901760
    %v183 = vsub.f32 %v181, %v182
    %v184 = vand.u32 %v183, 4294901760
    %185 = vmatmul.mubr.f32.gmra.mrb[0].mxu0 %v184
    %v186 = vpop.f32.mrb[0].mxu0
    %v187 = vadd.f32 %v74, %v186
    %v188 = vpop.f32.mrb[0].mxu0
    %189 = vmatprep.mubr.f32.mxu0 0.0
    %v190 = vand.u32 %v84, 4294901760
    %v191 = vsub.f32 %v84, %v190
    %v192 = vand.u32 %v191, 4294901760
    %v193 = vsub.f32 %v191, %v192
    %v194 = vand.u32 %v193, 4294901760
    %195 = vmatmul.mubr.f32.gmra.mrb[0].mxu0 %v194
    %v196 = vpop.f32.mrb[0].mxu0
    %v197 = vadd.f32 %v74, %v196
    %v198 = vpop.f32.mrb[0].mxu0
    %199 = vmatprep.mubr.f32.mxu0 0.0
    %v200 = vand.u32 %v87, 4294901760
    %v201 = vsub.f32 %v87, %v200
    %v202 = vand.u32 %v201, 4294901760
    %v203 = vsub.f32 %v201, %v202
    %v204 = vand.u32 %v203, 4294901760
    %205 = vmatmul.mubr.f32.gmra.mrb[0].mxu0 %v204
    %v206 = vpop.f32.mrb[0].mxu0
    %v207 = vadd.f32 %v74, %v206
    %v208 = vpop.f32.mrb[0].mxu0
    %209 = vmatprep.mubr.f32.mxu0 0.0
    %v210 = vand.u32 %v90, 4294901760
    %v211 = vsub.f32 %v90, %v210
    %v212 = vand.u32 %v211, 4294901760
    %v213 = vsub.f32 %v211, %v212
    %v214 = vand.u32 %v213, 4294901760
    %215 = vmatmul.mubr.f32.gmra.mrb[0].mxu0 %v214
    %v216 = vpop.f32.mrb[0].mxu0
    %v217 = vadd.f32 %v74, %v216
    %v218 = vpop.f32.mrb[0].mxu0
    %219 = vmatprep.mubr.f32.mxu0 0.0
    %v220 = vand.u32 %v93, 4294901760
    %v221 = vsub.f32 %v93, %v220
    %v222 = vand.u32 %v221, 4294901760
    %v223 = vsub.f32 %v221, %v222
    %v224 = vand.u32 %v223, 4294901760
    %225 = vmatmul.mubr.f32.gmra.mrb[0].mxu0 %v224
    %v226 = vpop.f32.mrb[0].mxu0
    %v227 = vadd.f32 %v74, %v226
    %v228 = vpop.f32.mrb[0].mxu0
    %229 = vmatprep.mubr.f32.mxu0 0.0
    %v230 = vand.u32 %v96, 4294901760
    %v231 = vsub.f32 %v96, %v230
    %v232 = vand.u32 %v231, 4294901760
    %v233 = vsub.f32 %v231, %v232
    %v234 = vand.u32 %v233, 4294901760
    %235 = vmatmul.mubr.f32.gmra.mrb[0].mxu0 %v234
    %v236 = vpop.f32.mrb[0].mxu0
    %v237 = vadd.f32 %v74, %v236
    %v238 = vpop.f32.mrb[0].mxu0
    %239 = vmatprep.mubr.f32.mxu0 0.0
    %v240 = vand.u32 %v99, 4294901760
    %v241 = vsub.f32 %v99, %v240
    %v242 = vand.u32 %v241, 4294901760
    %v243 = vsub.f32 %v241, %v242
    %v244 = vand.u32 %v243, 4294901760
    %245 = vmatmul.mubr.f32.gmra.mrb[0].mxu0 %v244
    %v246 = vpop.f32.mrb[0].mxu0
    %v247 = vadd.f32 %v74, %v246
    %v248 = vpop.f32.mrb[0].mxu0
    %249 = vdwg.mxu0
    %250 = vmatprep.subr.mxu0 0.0
    %v251 = vand.u32 %v65, 4294901760
    %v252 = vsub.f32 %v65, %v251
    %v253 = vand.u32 %v252, 4294901760
    %v254 = vsub.f32 %v252, %v253
    %v255 = vand.u32 %v254, 4294901760
    %256 = vmatpush1.msra.mxu0 %v255
    %257 = vmatprep.subr.mxu0 0.0
    %v258 = vand.u32 %v66, 4294901760
    %v259 = vsub.f32 %v66, %v258
    %v260 = vand.u32 %v259, 4294901760
    %v261 = vsub.f32 %v259, %v260
    %v262 = vand.u32 %v261, 4294901760
    %263 = vmatpush1.msra.mxu0 %v262
    %264 = vmatprep.subr.mxu0 0.0
    %v265 = vand.u32 %v67, 4294901760
    %v266 = vsub.f32 %v67, %v265
    %v267 = vand.u32 %v266, 4294901760
    %v268 = vsub.f32 %v266, %v267
    %v269 = vand.u32 %v268, 4294901760
    %270 = vmatpush1.msra.mxu0 %v269
    %271 = vmatprep.subr.mxu0 0.0
    %v272 = vand.u32 %v68, 4294901760
    %v273 = vsub.f32 %v68, %v272
    %v274 = vand.u32 %v273, 4294901760
    %v275 = vsub.f32 %v273, %v274
    %v276 = vand.u32 %v275, 4294901760
    %277 = vmatpush1.msra.mxu0 %v276
    %278 = vmatprep.subr.mxu0 0.0
    %279 = vmatpush1.msra.mxu0 0.0
    %280 = vmatprep.subr.mxu0 0.0
    %281 = vmatpush1.msra.mxu0 0.0
    %282 = vmatprep.subr.mxu0 0.0
    %283 = vmatpush1.msra.mxu0 0.0
    %284 = vmatprep.subr.mxu0 0.0
    %285 = vmatpush1.msra.mxu0 0.0
    %286 = vmatprep.subr.mxu0 0.0
    %287 = vmatpush1.msra.mxu0 0.0
    %288 = vmatprep.subr.mxu0 0.0
    %289 = vmatpush1.msra.mxu0 0.0
    %290 = vmatprep.subr.mxu0 0.0
    %291 = vmatpush1.msra.mxu0 0.0
    %292 = vmatprep.subr.mxu0 0.0
    %293 = vmatpush1.msra.mxu0 0.0
    %294 = vmatprep.subr.mxu0 0.0
    %295 = vmatpush1.msra.mxu0 0.0
    %296 = vmatprep.subr.mxu0 0.0
    %297 = vmatpush1.msra.mxu0 0.0
    %298 = vmatprep.subr.mxu0 0.0
    %299 = vmatpush1.msra.mxu0 0.0
    %300 = vmatprep.subr.mxu0 0.0
    %301 = vmatpush1.msra.mxu0 0.0
    %302 = vmatprep.subr.mxu0 0.0
    %303 = vmatpush1.msra.mxu0 0.0
    %304 = vmatprep.subr.mxu0 0.0
    %305 = vmatpush1.msra.mxu0 0.0
    %306 = vmatprep.subr.mxu0 0.0
    %307 = vmatpush1.msra.mxu0 0.0
    %308 = vmatprep.subr.mxu0 0.0
    %309 = vmatpush1.msra.mxu0 0.0
    %310 = vmatprep.subr.mxu0 0.0
    %311 = vmatpush1.msra.mxu0 0.0
    %312 = vmatprep.subr.mxu0 0.0
    %313 = vmatpush1.msra.mxu0 0.0
    %314 = vmatprep.subr.mxu0 0.0
    %315 = vmatpush1.msra.mxu0 0.0
    %316 = vmatprep.subr.mxu0 0.0
    %317 = vmatpush1.msra.mxu0 0.0
    %318 = vmatprep.subr.mxu0 0.0
    %319 = vmatpush1.msra.mxu0 0.0
    %320 = vmatprep.subr.mxu0 0.0
    %321 = vmatpush1.msra.mxu0 0.0
    %322 = vmatprep.subr.mxu0 0.0
    %323 = vmatpush1.msra.mxu0 0.0
    %324 = vmatprep.subr.mxu0 0.0
    %325 = vmatpush1.msra.mxu0 0.0
    %326 = vmatprep.subr.mxu0 0.0
    %327 = vmatpush1.msra.mxu0 0.0
    %328 = vmatprep.subr.mxu0 0.0
    %329 = vmatpush1.msra.mxu0 0.0
    %330 = vmatprep.subr.mxu0 0.0
    %331 = vmatpush1.msra.mxu0 0.0
    %332 = vmatprep.subr.mxu0 0.0
    %333 = vmatpush1.msra.mxu0 0.0
    %334 = vmatprep.mubr.f32.mxu0 0.0
    %v335 = vand.u32 %v78, 4294901760
    %336 = vmatmul.mubr.f32.gmra.mrb[0].mxu0 %v335
    %v337 = vpop.f32.mrb[0].mxu0
    %v338 = vadd.f32 %v177, %v337
    %v339 = vpop.f32.mrb[0].mxu0
    %340 = vmatprep.mubr.f32.mxu0 0.0
    %v341 = vand.u32 %v81, 4294901760
    %342 = vmatmul.mubr.f32.gmra.mrb[0].mxu0 %v341
    %v343 = vpop.f32.mrb[0].mxu0
    %v344 = vadd.f32 %v187, %v343
    %v345 = vpop.f32.mrb[0].mxu0
    %346 = vmatprep.mubr.f32.mxu0 0.0
    %v347 = vand.u32 %v84, 4294901760
    %348 = vmatmul.mubr.f32.gmra.mrb[0].mxu0 %v347
    %v349 = vpop.f32.mrb[0].mxu0
    %v350 = vadd.f32 %v197, %v349
    %v351 = vpop.f32.mrb[0].mxu0
    %352 = vmatprep.mubr.f32.mxu0 0.0
    %v353 = vand.u32 %v87, 4294901760
    %354 = vmatmul.mubr.f32.gmra.mrb[0].mxu0 %v353
    %v355 = vpop.f32.mrb[0].mxu0
    %v356 = vadd.f32 %v207, %v355
    %v357 = vpop.f32.mrb[0].mxu0
    %358 = vmatprep.mubr.f32.mxu0 0.0
    %v359 = vand.u32 %v90, 4294901760
    %360 = vmatmul.mubr.f32.gmra.mrb[0].mxu0 %v359
    %v361 = vpop.f32.mrb[0].mxu0
    %v362 = vadd.f32 %v217, %v361
    %v363 = vpop.f32.mrb[0].mxu0
    %364 = vmatprep.mubr.f32.mxu0 0.0
    %v365 = vand.u32 %v93, 4294901760
    %366 = vmatmul.mubr.f32.gmra.mrb[0].mxu0 %v365
    %v367 = vpop.f32.mrb[0].mxu0
    %v368 = vadd.f32 %v227, %v367
    %v369 = vpop.f32.mrb[0].mxu0
    %370 = vmatprep.mubr.f32.mxu0 0.0
    %v371 = vand.u32 %v96, 4294901760
    %372 = vmatmul.mubr.f32.gmra.mrb[0].mxu0 %v371
    %v373 = vpop.f32.mrb[0].mxu0
    %v374 = vadd.f32 %v237, %v373
    %v375 = vpop.f32.mrb[0].mxu0
    %376 = vmatprep.mubr.f32.mxu0 0.0
    %v377 = vand.u32 %v99, 4294901760
    %378 = vmatmul.mubr.f32.gmra.mrb[0].mxu0 %v377
    %v379 = vpop.f32.mrb[0].mxu0
    %v380 = vadd.f32 %v247, %v379
    %v381 = vpop.f32.mrb[0].mxu0
    %382 = vdwg.mxu0
    %383 = vmatprep.subr.mxu0 0.0
    %v384 = vand.u32 %v65, 4294901760
    %v385 = vsub.f32 %v65, %v384
    %386 = vmatpush1.msra.mxu0 %v385
    %387 = vmatprep.subr.mxu0 0.0
    %v388 = vand.u32 %v66, 4294901760
    %v389 = vsub.f32 %v66, %v388
    %390 = vmatpush1.msra.mxu0 %v389
    %391 = vmatprep.subr.mxu0 0.0
    %v392 = vand.u32 %v67, 4294901760
    %v393 = vsub.f32 %v67, %v392
    %394 = vmatpush1.msra.mxu0 %v393
    %395 = vmatprep.subr.mxu0 0.0
    %v396 = vand.u32 %v68, 4294901760
    %v397 = vsub.f32 %v68, %v396
    %398 = vmatpush1.msra.mxu0 %v397
    %399 = vmatprep.subr.mxu0 0.0
    %400 = vmatpush1.msra.mxu0 0.0
    %401 = vmatprep.subr.mxu0 0.0
    %402 = vmatpush1.msra.mxu0 0.0
    %403 = vmatprep.subr.mxu0 0.0
    %404 = vmatpush1.msra.mxu0 0.0
    %405 = vmatprep.subr.mxu0 0.0
    %406 = vmatpush1.msra.mxu0 0.0
    %407 = vmatprep.subr.mxu0 0.0
    %408 = vmatpush1.msra.mxu0 0.0
    %409 = vmatprep.subr.mxu0 0.0
    %410 = vmatpush1.msra.mxu0 0.0
    %411 = vmatprep.subr.mxu0 0.0
    %412 = vmatpush1.msra.mxu0 0.0
    %413 = vmatprep.subr.mxu0 0.0
    %414 = vmatpush1.msra.mxu0 0.0
    %415 = vmatprep.subr.mxu0 0.0
    %416 = vmatpush1.msra.mxu0 0.0
    %417 = vmatprep.subr.mxu0 0.0
    %418 = vmatpush1.msra.mxu0 0.0
    %419 = vmatprep.subr.mxu0 0.0
    %420 = vmatpush1.msra.mxu0 0.0
    %421 = vmatprep.subr.mxu0 0.0
    %422 = vmatpush1.msra.mxu0 0.0
    %423 = vmatprep.subr.mxu0 0.0
    %424 = vmatpush1.msra.mxu0 0.0
    %425 = vmatprep.subr.mxu0 0.0
    %426 = vmatpush1.msra.mxu0 0.0
    %427 = vmatprep.subr.mxu0 0.0
    %428 = vmatpush1.msra.mxu0 0.0
    %429 = vmatprep.subr.mxu0 0.0
    %430 = vmatpush1.msra.mxu0 0.0
    %431 = vmatprep.subr.mxu0 0.0
    %432 = vmatpush1.msra.mxu0 0.0
    %433 = vmatprep.subr.mxu0 0.0
    %434 = vmatpush1.msra.mxu0 0.0
    %435 = vmatprep.subr.mxu0 0.0
    %436 = vmatpush1.msra.mxu0 0.0
    %437 = vmatprep.subr.mxu0 0.0
    %438 = vmatpush1.msra.mxu0 0.0
    %439 = vmatprep.subr.mxu0 0.0
    %440 = vmatpush1.msra.mxu0 0.0
    %441 = vmatprep.subr.mxu0 0.0
    %442 = vmatpush1.msra.mxu0 0.0
    %443 = vmatprep.subr.mxu0 0.0
    %444 = vmatpush1.msra.mxu0 0.0
    %445 = vmatprep.subr.mxu0 0.0
    %446 = vmatpush1.msra.mxu0 0.0
    %447 = vmatprep.subr.mxu0 0.0
    %448 = vmatpush1.msra.mxu0 0.0
    %449 = vmatprep.subr.mxu0 0.0
    %450 = vmatpush1.msra.mxu0 0.0
    %451 = vmatprep.subr.mxu0 0.0
    %452 = vmatpush1.msra.mxu0 0.0
    %453 = vmatprep.subr.mxu0 0.0
    %454 = vmatpush1.msra.mxu0 0.0
    %455 = vmatprep.mubr.f32.mxu0 0.0
    %v456 = vand.u32 %v78, 4294901760
    %v457 = vsub.f32 %v78, %v456
    %458 = vmatmul.mubr.f32.gmra.mrb[0].mxu0 %v457
    %v459 = vpop.f32.mrb[0].mxu0
    %v460 = vadd.f32 %v338, %v459
    %v461 = vpop.f32.mrb[0].mxu0
    %462 = vmatprep.mubr.f32.mxu0 0.0
    %v463 = vand.u32 %v81, 4294901760
    %v464 = vsub.f32 %v81, %v463
    %465 = vmatmul.mubr.f32.gmra.mrb[0].mxu0 %v464
    %v466 = vpop.f32.mrb[0].mxu0
    %v467 = vadd.f32 %v344, %v466
    %v468 = vpop.f32.mrb[0].mxu0
    %469 = vmatprep.mubr.f32.mxu0 0.0
    %v470 = vand.u32 %v84, 4294901760
    %v471 = vsub.f32 %v84, %v470
    %472 = vmatmul.mubr.f32.gmra.mrb[0].mxu0 %v471
    %v473 = vpop.f32.mrb[0].mxu0
    %v474 = vadd.f32 %v350, %v473
    %v475 = vpop.f32.mrb[0].mxu0
    %476 = vmatprep.mubr.f32.mxu0 0.0
    %v477 = vand.u32 %v87, 4294901760
    %v478 = vsub.f32 %v87, %v477
    %479 = vmatmul.mubr.f32.gmra.mrb[0].mxu0 %v478
    %v480 = vpop.f32.mrb[0].mxu0
    %v481 = vadd.f32 %v356, %v480
    %v482 = vpop.f32.mrb[0].mxu0
    %483 = vmatprep.mubr.f32.mxu0 0.0
    %v484 = vand.u32 %v90, 4294901760
    %v485 = vsub.f32 %v90, %v484
    %486 = vmatmul.mubr.f32.gmra.mrb[0].mxu0 %v485
    %v487 = vpop.f32.mrb[0].mxu0
    %v488 = vadd.f32 %v362, %v487
    %v489 = vpop.f32.mrb[0].mxu0
    %490 = vmatprep.mubr.f32.mxu0 0.0
    %v491 = vand.u32 %v93, 4294901760
    %v492 = vsub.f32 %v93, %v491
    %493 = vmatmul.mubr.f32.gmra.mrb[0].mxu0 %v492
    %v494 = vpop.f32.mrb[0].mxu0
    %v495 = vadd.f32 %v368, %v494
    %v496 = vpop.f32.mrb[0].mxu0
    %497 = vmatprep.mubr.f32.mxu0 0.0
    %v498 = vand.u32 %v96, 4294901760
    %v499 = vsub.f32 %v96, %v498
    %500 = vmatmul.mubr.f32.gmra.mrb[0].mxu0 %v499
    %v501 = vpop.f32.mrb[0].mxu0
    %v502 = vadd.f32 %v374, %v501
    %v503 = vpop.f32.mrb[0].mxu0
    %504 = vmatprep.mubr.f32.mxu0 0.0
    %v505 = vand.u32 %v99, 4294901760
    %v506 = vsub.f32 %v99, %v505
    %507 = vmatmul.mubr.f32.gmra.mrb[0].mxu0 %v506
    %v508 = vpop.f32.mrb[0].mxu0
    %v509 = vadd.f32 %v380, %v508
    %v510 = vpop.f32.mrb[0].mxu0
    %511 = vdwg.mxu0
    %512 = vmatprep.subr.mxu0 0.0
    %v513 = vand.u32 %v65, 4294901760
    %514 = vmatpush1.msra.mxu0 %v513
    %515 = vmatprep.subr.mxu0 0.0
    %v516 = vand.u32 %v66, 4294901760
    %517 = vmatpush1.msra.mxu0 %v516
    %518 = vmatprep.subr.mxu0 0.0
    %v519 = vand.u32 %v67, 4294901760
    %520 = vmatpush1.msra.mxu0 %v519
    %521 = vmatprep.subr.mxu0 0.0
    %v522 = vand.u32 %v68, 4294901760
    %523 = vmatpush1.msra.mxu0 %v522
    %524 = vmatprep.subr.mxu0 0.0
    %525 = vmatpush1.msra.mxu0 0.0
    %526 = vmatprep.subr.mxu0 0.0
    %527 = vmatpush1.msra.mxu0 0.0
    %528 = vmatprep.subr.mxu0 0.0
    %529 = vmatpush1.msra.mxu0 0.0
    %530 = vmatprep.subr.mxu0 0.0
    %531 = vmatpush1.msra.mxu0 0.0
    %532 = vmatprep.subr.mxu0 0.0
    %533 = vmatpush1.msra.mxu0 0.0
    %534 = vmatprep.subr.mxu0 0.0
    %535 = vmatpush1.msra.mxu0 0.0
    %536 = vmatprep.subr.mxu0 0.0
    %537 = vmatpush1.msra.mxu0 0.0
    %538 = vmatprep.subr.mxu0 0.0
    %539 = vmatpush1.msra.mxu0 0.0
    %540 = vmatprep.subr.mxu0 0.0
    %541 = vmatpush1.msra.mxu0 0.0
    %542 = vmatprep.subr.mxu0 0.0
    %543 = vmatpush1.msra.mxu0 0.0
    %544 = vmatprep.subr.mxu0 0.0
    %545 = vmatpush1.msra.mxu0 0.0
    %546 = vmatprep.subr.mxu0 0.0
    %547 = vmatpush1.msra.mxu0 0.0
    %548 = vmatprep.subr.mxu0 0.0
    %549 = vmatpush1.msra.mxu0 0.0
    %550 = vmatprep.subr.mxu0 0.0
    %551 = vmatpush1.msra.mxu0 0.0
    %552 = vmatprep.subr.mxu0 0.0
    %553 = vmatpush1.msra.mxu0 0.0
    %554 = vmatprep.subr.mxu0 0.0
    %555 = vmatpush1.msra.mxu0 0.0
    %556 = vmatprep.subr.mxu0 0.0
    %557 = vmatpush1.msra.mxu0 0.0
    %558 = vmatprep.subr.mxu0 0.0
    %559 = vmatpush1.msra.mxu0 0.0
    %560 = vmatprep.subr.mxu0 0.0
    %561 = vmatpush1.msra.mxu0 0.0
    %562 = vmatprep.subr.mxu0 0.0
    %563 = vmatpush1.msra.mxu0 0.0
    %564 = vmatprep.subr.mxu0 0.0
    %565 = vmatpush1.msra.mxu0 0.0
    %566 = vmatprep.subr.mxu0 0.0
    %567 = vmatpush1.msra.mxu0 0.0
    %568 = vmatprep.subr.mxu0 0.0
    %569 = vmatpush1.msra.mxu0 0.0
    %570 = vmatprep.subr.mxu0 0.0
    %571 = vmatpush1.msra.mxu0 0.0
    %572 = vmatprep.subr.mxu0 0.0
    %573 = vmatpush1.msra.mxu0 0.0
    %574 = vmatprep.subr.mxu0 0.0
    %575 = vmatpush1.msra.mxu0 0.0
    %576 = vmatprep.subr.mxu0 0.0
    %577 = vmatpush1.msra.mxu0 0.0
    %578 = vmatprep.subr.mxu0 0.0
    %579 = vmatpush1.msra.mxu0 0.0
    %580 = vmatprep.mubr.f32.mxu0 0.0
    %v581 = vand.u32 %v78, 4294901760
    %v582 = vsub.f32 %v78, %v581
    %v583 = vand.u32 %v582, 4294901760
    %584 = vmatmul.mubr.f32.gmra.mrb[0].mxu0 %v583
    %v585 = vpop.f32.mrb[0].mxu0
    %v586 = vadd.f32 %v460, %v585
    %v587 = vpop.f32.mrb[0].mxu0
    %588 = vmatprep.mubr.f32.mxu0 0.0
    %v589 = vand.u32 %v81, 4294901760
    %v590 = vsub.f32 %v81, %v589
    %v591 = vand.u32 %v590, 4294901760
    %592 = vmatmul.mubr.f32.gmra.mrb[0].mxu0 %v591
    %v593 = vpop.f32.mrb[0].mxu0
    %v594 = vadd.f32 %v467, %v593
    %v595 = vpop.f32.mrb[0].mxu0
    %596 = vmatprep.mubr.f32.mxu0 0.0
    %v597 = vand.u32 %v84, 4294901760
    %v598 = vsub.f32 %v84, %v597
    %v599 = vand.u32 %v598, 4294901760
    %600 = vmatmul.mubr.f32.gmra.mrb[0].mxu0 %v599
    %v601 = vpop.f32.mrb[0].mxu0
    %v602 = vadd.f32 %v474, %v601
    %v603 = vpop.f32.mrb[0].mxu0
    %604 = vmatprep.mubr.f32.mxu0 0.0
    %v605 = vand.u32 %v87, 4294901760
    %v606 = vsub.f32 %v87, %v605
    %v607 = vand.u32 %v606, 4294901760
    %608 = vmatmul.mubr.f32.gmra.mrb[0].mxu0 %v607
    %v609 = vpop.f32.mrb[0].mxu0
    %v610 = vadd.f32 %v481, %v609
    %v611 = vpop.f32.mrb[0].mxu0
    %612 = vmatprep.mubr.f32.mxu0 0.0
    %v613 = vand.u32 %v90, 4294901760
    %v614 = vsub.f32 %v90, %v613
    %v615 = vand.u32 %v614, 4294901760
    %616 = vmatmul.mubr.f32.gmra.mrb[0].mxu0 %v615
    %v617 = vpop.f32.mrb[0].mxu0
    %v618 = vadd.f32 %v488, %v617
    %v619 = vpop.f32.mrb[0].mxu0
    %620 = vmatprep.mubr.f32.mxu0 0.0
    %v621 = vand.u32 %v93, 4294901760
    %v622 = vsub.f32 %v93, %v621
    %v623 = vand.u32 %v622, 4294901760
    %624 = vmatmul.mubr.f32.gmra.mrb[0].mxu0 %v623
    %v625 = vpop.f32.mrb[0].mxu0
    %v626 = vadd.f32 %v495, %v625
    %v627 = vpop.f32.mrb[0].mxu0
    %628 = vmatprep.mubr.f32.mxu0 0.0
    %v629 = vand.u32 %v96, 4294901760
    %v630 = vsub.f32 %v96, %v629
    %v631 = vand.u32 %v630, 4294901760
    %632 = vmatmul.mubr.f32.gmra.mrb[0].mxu0 %v631
    %v633 = vpop.f32.mrb[0].mxu0
    %v634 = vadd.f32 %v502, %v633
    %v635 = vpop.f32.mrb[0].mxu0
    %636 = vmatprep.mubr.f32.mxu0 0.0
    %v637 = vand.u32 %v99, 4294901760
    %v638 = vsub.f32 %v99, %v637
    %v639 = vand.u32 %v638, 4294901760
    %640 = vmatmul.mubr.f32.gmra.mrb[0].mxu0 %v639
    %v641 = vpop.f32.mrb[0].mxu0
    %v642 = vadd.f32 %v509, %v641
    %v643 = vpop.f32.mrb[0].mxu0
    %644 = vdwg.mxu0
    %645 = vmatprep.subr.mxu0 0.0
    %v646 = vand.u32 %v65, 4294901760
    %v647 = vsub.f32 %v65, %v646
    %v648 = vand.u32 %v647, 4294901760
    %649 = vmatpush1.msra.mxu0 %v648
    %650 = vmatprep.subr.mxu0 0.0
    %v651 = vand.u32 %v66, 4294901760
    %v652 = vsub.f32 %v66, %v651
    %v653 = vand.u32 %v652, 4294901760
    %654 = vmatpush1.msra.mxu0 %v653
    %655 = vmatprep.subr.mxu0 0.0
    %v656 = vand.u32 %v67, 4294901760
    %v657 = vsub.f32 %v67, %v656
    %v658 = vand.u32 %v657, 4294901760
    %659 = vmatpush1.msra.mxu0 %v658
    %660 = vmatprep.subr.mxu0 0.0
    %v661 = vand.u32 %v68, 4294901760
    %v662 = vsub.f32 %v68, %v661
    %v663 = vand.u32 %v662, 4294901760
    %664 = vmatpush1.msra.mxu0 %v663
    %665 = vmatprep.subr.mxu0 0.0
    %666 = vmatpush1.msra.mxu0 0.0
    %667 = vmatprep.subr.mxu0 0.0
    %668 = vmatpush1.msra.mxu0 0.0
    %669 = vmatprep.subr.mxu0 0.0
    %670 = vmatpush1.msra.mxu0 0.0
    %671 = vmatprep.subr.mxu0 0.0
    %672 = vmatpush1.msra.mxu0 0.0
    %673 = vmatprep.subr.mxu0 0.0
    %674 = vmatpush1.msra.mxu0 0.0
    %675 = vmatprep.subr.mxu0 0.0
    %676 = vmatpush1.msra.mxu0 0.0
    %677 = vmatprep.subr.mxu0 0.0
    %678 = vmatpush1.msra.mxu0 0.0
    %679 = vmatprep.subr.mxu0 0.0
    %680 = vmatpush1.msra.mxu0 0.0
    %681 = vmatprep.subr.mxu0 0.0
    %682 = vmatpush1.msra.mxu0 0.0
    %683 = vmatprep.subr.mxu0 0.0
    %684 = vmatpush1.msra.mxu0 0.0
    %685 = vmatprep.subr.mxu0 0.0
    %686 = vmatpush1.msra.mxu0 0.0
    %687 = vmatprep.subr.mxu0 0.0
    %688 = vmatpush1.msra.mxu0 0.0
    %689 = vmatprep.subr.mxu0 0.0
    %690 = vmatpush1.msra.mxu0 0.0
    %691 = vmatprep.subr.mxu0 0.0
    %692 = vmatpush1.msra.mxu0 0.0
    %693 = vmatprep.subr.mxu0 0.0
    %694 = vmatpush1.msra.mxu0 0.0
    %695 = vmatprep.subr.mxu0 0.0
    %696 = vmatpush1.msra.mxu0 0.0
    %697 = vmatprep.subr.mxu0 0.0
    %698 = vmatpush1.msra.mxu0 0.0
    %699 = vmatprep.subr.mxu0 0.0
    %700 = vmatpush1.msra.mxu0 0.0
    %701 = vmatprep.subr.mxu0 0.0
    %702 = vmatpush1.msra.mxu0 0.0
    %703 = vmatprep.subr.mxu0 0.0
    %704 = vmatpush1.msra.mxu0 0.0
    %705 = vmatprep.subr.mxu0 0.0
    %706 = vmatpush1.msra.mxu0 0.0
    %707 = vmatprep.subr.mxu0 0.0
    %708 = vmatpush1.msra.mxu0 0.0
    %709 = vmatprep.subr.mxu0 0.0
    %710 = vmatpush1.msra.mxu0 0.0
    %711 = vmatprep.subr.mxu0 0.0
    %712 = vmatpush1.msra.mxu0 0.0
    %713 = vmatprep.subr.mxu0 0.0
    %714 = vmatpush1.msra.mxu0 0.0
    %715 = vmatprep.subr.mxu0 0.0
    %716 = vmatpush1.msra.mxu0 0.0
    %717 = vmatprep.subr.mxu0 0.0
    %718 = vmatpush1.msra.mxu0 0.0
    %719 = vmatprep.subr.mxu0 0.0
    %720 = vmatpush1.msra.mxu0 0.0
    %721 = vmatprep.mubr.f32.mxu0 0.0
    %v722 = vand.u32 %v78, 4294901760
    %723 = vmatmul.mubr.f32.gmra.mrb[0].mxu0 %v722
    %v724 = vpop.f32.mrb[0].mxu0
    %v725 = vadd.f32 %v586, %v724
    %v726 = vpop.f32.mrb[0].mxu0
    %727 = vmatprep.mubr.f32.mxu0 0.0
    %v728 = vand.u32 %v81, 4294901760
    %729 = vmatmul.mubr.f32.gmra.mrb[0].mxu0 %v728
    %v730 = vpop.f32.mrb[0].mxu0
    %v731 = vadd.f32 %v594, %v730
    %v732 = vpop.f32.mrb[0].mxu0
    %733 = vmatprep.mubr.f32.mxu0 0.0
    %v734 = vand.u32 %v84, 4294901760
    %735 = vmatmul.mubr.f32.gmra.mrb[0].mxu0 %v734
    %v736 = vpop.f32.mrb[0].mxu0
    %v737 = vadd.f32 %v602, %v736
    %v738 = vpop.f32.mrb[0].mxu0
    %739 = vmatprep.mubr.f32.mxu0 0.0
    %v740 = vand.u32 %v87, 4294901760
    %741 = vmatmul.mubr.f32.gmra.mrb[0].mxu0 %v740
    %v742 = vpop.f32.mrb[0].mxu0
    %v743 = vadd.f32 %v610, %v742
    %v744 = vpop.f32.mrb[0].mxu0
    %745 = vmatprep.mubr.f32.mxu0 0.0
    %v746 = vand.u32 %v90, 4294901760
    %747 = vmatmul.mubr.f32.gmra.mrb[0].mxu0 %v746
    %v748 = vpop.f32.mrb[0].mxu0
    %v749 = vadd.f32 %v618, %v748
    %v750 = vpop.f32.mrb[0].mxu0
    %751 = vmatprep.mubr.f32.mxu0 0.0
    %v752 = vand.u32 %v93, 4294901760
    %753 = vmatmul.mubr.f32.gmra.mrb[0].mxu0 %v752
    %v754 = vpop.f32.mrb[0].mxu0
    %v755 = vadd.f32 %v626, %v754
    %v756 = vpop.f32.mrb[0].mxu0
    %757 = vmatprep.mubr.f32.mxu0 0.0
    %v758 = vand.u32 %v96, 4294901760
    %759 = vmatmul.mubr.f32.gmra.mrb[0].mxu0 %v758
    %v760 = vpop.f32.mrb[0].mxu0
    %v761 = vadd.f32 %v634, %v760
    %v762 = vpop.f32.mrb[0].mxu0
    %763 = vmatprep.mubr.f32.mxu0 0.0
    %v764 = vand.u32 %v99, 4294901760
    %765 = vmatmul.mubr.f32.gmra.mrb[0].mxu0 %v764
    %v766 = vpop.f32.mrb[0].mxu0
    %v767 = vadd.f32 %v642, %v766
    %v768 = vpop.f32.mrb[0].mxu0
    %769 = vdwg.mxu0
    %770 = vmatprep.subr.mxu0 0.0
    %v771 = vand.u32 %v65, 4294901760
    %772 = vmatpush1.msra.mxu0 %v771
    %773 = vmatprep.subr.mxu0 0.0
    %v774 = vand.u32 %v66, 4294901760
    %775 = vmatpush1.msra.mxu0 %v774
    %776 = vmatprep.subr.mxu0 0.0
    %v777 = vand.u32 %v67, 4294901760
    %778 = vmatpush1.msra.mxu0 %v777
    %779 = vmatprep.subr.mxu0 0.0
    %v780 = vand.u32 %v68, 4294901760
    %781 = vmatpush1.msra.mxu0 %v780
    %782 = vmatprep.subr.mxu0 0.0
    %783 = vmatpush1.msra.mxu0 0.0
    %784 = vmatprep.subr.mxu0 0.0
    %785 = vmatpush1.msra.mxu0 0.0
    %786 = vmatprep.subr.mxu0 0.0
    %787 = vmatpush1.msra.mxu0 0.0
    %788 = vmatprep.subr.mxu0 0.0
    %789 = vmatpush1.msra.mxu0 0.0
    %790 = vmatprep.subr.mxu0 0.0
    %791 = vmatpush1.msra.mxu0 0.0
    %792 = vmatprep.subr.mxu0 0.0
    %793 = vmatpush1.msra.mxu0 0.0
    %794 = vmatprep.subr.mxu0 0.0
    %795 = vmatpush1.msra.mxu0 0.0
    %796 = vmatprep.subr.mxu0 0.0
    %797 = vmatpush1.msra.mxu0 0.0
    %798 = vmatprep.subr.mxu0 0.0
    %799 = vmatpush1.msra.mxu0 0.0
    %800 = vmatprep.subr.mxu0 0.0
    %801 = vmatpush1.msra.mxu0 0.0
    %802 = vmatprep.subr.mxu0 0.0
    %803 = vmatpush1.msra.mxu0 0.0
    %804 = vmatprep.subr.mxu0 0.0
    %805 = vmatpush1.msra.mxu0 0.0
    %806 = vmatprep.subr.mxu0 0.0
    %807 = vmatpush1.msra.mxu0 0.0
    %808 = vmatprep.subr.mxu0 0.0
    %809 = vmatpush1.msra.mxu0 0.0
    %810 = vmatprep.subr.mxu0 0.0
    %811 = vmatpush1.msra.mxu0 0.0
    %812 = vmatprep.subr.mxu0 0.0
    %813 = vmatpush1.msra.mxu0 0.0
    %814 = vmatprep.subr.mxu0 0.0
    %815 = vmatpush1.msra.mxu0 0.0
    %816 = vmatprep.subr.mxu0 0.0
    %817 = vmatpush1.msra.mxu0 0.0
    %818 = vmatprep.subr.mxu0 0.0
    %819 = vmatpush1.msra.mxu0 0.0
    %820 = vmatprep.subr.mxu0 0.0
    %821 = vmatpush1.msra.mxu0 0.0
    %822 = vmatprep.subr.mxu0 0.0
    %823 = vmatpush1.msra.mxu0 0.0
    %824 = vmatprep.subr.mxu0 0.0
    %825 = vmatpush1.msra.mxu0 0.0
    %826 = vmatprep.subr.mxu0 0.0
    %827 = vmatpush1.msra.mxu0 0.0
    %828 = vmatprep.subr.mxu0 0.0
    %829 = vmatpush1.msra.mxu0 0.0
    %830 = vmatprep.subr.mxu0 0.0
    %831 = vmatpush1.msra.mxu0 0.0
    %832 = vmatprep.subr.mxu0 0.0
    %833 = vmatpush1.msra.mxu0 0.0
    %834 = vmatprep.subr.mxu0 0.0
    %835 = vmatpush1.msra.mxu0 0.0
    %836 = vmatprep.subr.mxu0 0.0
    %837 = vmatpush1.msra.mxu0 0.0
    %838 = vmatprep.mubr.f32.mxu0 0.0
    %v839 = vand.u32 %v78, 4294901760
    %840 = vmatmul.mubr.f32.gmra.mrb[0].mxu0 %v839
    %v841 = vpop.f32.mrb[0].mxu0
    %v842 = vadd.f32 %v725, %v841
    %v843 = vpop.f32.mrb[0].mxu0
    %844 = vmatprep.mubr.f32.mxu0 0.0
    %v845 = vand.u32 %v81, 4294901760
    %846 = vmatmul.mubr.f32.gmra.mrb[0].mxu0 %v845
    %v847 = vpop.f32.mrb[0].mxu0
    %v848 = vadd.f32 %v731, %v847
    %v849 = vpop.f32.mrb[0].mxu0
    %850 = vmatprep.mubr.f32.mxu0 0.0
    %v851 = vand.u32 %v84, 4294901760
    %852 = vmatmul.mubr.f32.gmra.mrb[0].mxu0 %v851
    %v853 = vpop.f32.mrb[0].mxu0
    %v854 = vadd.f32 %v737, %v853
    %v855 = vpop.f32.mrb[0].mxu0
    %856 = vmatprep.mubr.f32.mxu0 0.0
    %v857 = vand.u32 %v87, 4294901760
    %858 = vmatmul.mubr.f32.gmra.mrb[0].mxu0 %v857
    %v859 = vpop.f32.mrb[0].mxu0
    %v860 = vadd.f32 %v743, %v859
    %v861 = vpop.f32.mrb[0].mxu0
    %862 = vmatprep.mubr.f32.mxu0 0.0
    %v863 = vand.u32 %v90, 4294901760
    %864 = vmatmul.mubr.f32.gmra.mrb[0].mxu0 %v863
    %v865 = vpop.f32.mrb[0].mxu0
    %v866 = vadd.f32 %v749, %v865
    %v867 = vpop.f32.mrb[0].mxu0
    %868 = vmatprep.mubr.f32.mxu0 0.0
    %v869 = vand.u32 %v93, 4294901760
    %870 = vmatmul.mubr.f32.gmra.mrb[0].mxu0 %v869
    %v871 = vpop.f32.mrb[0].mxu0
    %v872 = vadd.f32 %v755, %v871
    %v873 = vpop.f32.mrb[0].mxu0
    %874 = vmatprep.mubr.f32.mxu0 0.0
    %v875 = vand.u32 %v96, 4294901760
    %876 = vmatmul.mubr.f32.gmra.mrb[0].mxu0 %v875
    %v877 = vpop.f32.mrb[0].mxu0
    %v878 = vadd.f32 %v761, %v877
    %v879 = vpop.f32.mrb[0].mxu0
    %880 = vmatprep.mubr.f32.mxu0 0.0
    %v881 = vand.u32 %v99, 4294901760
    %882 = vmatmul.mubr.f32.gmra.mrb[0].mxu0 %v881
    %v883 = vpop.f32.mrb[0].mxu0
    %v884 = vadd.f32 %v767, %v883
    %v885 = vpop.f32.mrb[0].mxu0
    %886 = vdwg.mxu0
    %v887 = vtanh.pop %v842
    %v888 = vtanh.pop %v848
    %v889 = vtanh.pop %v854
    %v890 = vtanh.pop %v860
    %v891 = vtanh.pop %v866
    %v892 = vtanh.pop %v872
    %v893 = vtanh.pop %v878
    %v894 = vtanh.pop %v884
    %v895 = vld [vmem:[%s4] sm:$0x1]
    %v897 = vlaneseq
    %v898 = vshrl.u32 %v897, 7
    %v899 = vsub.s32 0, %v898
    %v900 = vrot.slane %v895, %v899
    %v902 = vmul.f32 %v887, %v900
    %v903 = vmul.f32 %v888, %v900
    %v904 = vmul.f32 %v889, %v900
    %v905 = vmul.f32 %v890, %v900
    %v906 = vmul.f32 %v891, %v900
    %v907 = vmul.f32 %v892, %v900
    %v908 = vmul.f32 %v893, %v900
    %v909 = vmul.f32 %v894, %v900
    %vm910 = vcmask 130048
    %v911 = vsel %vm910, %v902, 0.0
    %912 = vadd.xlane.f32.xlu0 %v911
    %v913 = vpop.xlane.xlu0 %912
    %v914 = vsel %vm910, %v903, 0.0
    %915 = vadd.xlane.f32.xlu0 %v914
    %v916 = vpop.xlane.xlu0 %915
    %v917 = vsel %vm910, %v904, 0.0
    %918 = vadd.xlane.f32.xlu0 %v917
    %v919 = vpop.xlane.xlu0 %918
    %v920 = vsel %vm910, %v905, 0.0
    %921 = vadd.xlane.f32.xlu0 %v920
    %v922 = vpop.xlane.xlu0 %921
    %v923 = vsel %vm910, %v906, 0.0
    %924 = vadd.xlane.f32.xlu0 %v923
    %v925 = vpop.xlane.xlu0 %924
    %v926 = vsel %vm910, %v907, 0.0
    %927 = vadd.xlane.f32.xlu0 %v926
    %v928 = vpop.xlane.xlu0 %927
    %v929 = vsel %vm910, %v908, 0.0
    %930 = vadd.xlane.f32.xlu0 %v929
    %v931 = vpop.xlane.xlu0 %930
    %v932 = vsel %vm910, %v909, 0.0
    %933 = vadd.xlane.f32.xlu0 %v932
    %v934 = vpop.xlane.xlu0 %933
    %v935 = vld [vmem:[#allocation2] sm:$0x1]
    %v937 = vlaneseq
    %v938 = vshrl.u32 %v937, 7
    %v939 = vsub.s32 0, %v938
    %v940 = vrot.slane %v935, %v939
    %941 = vset.pattern.permute.xlu0 0
    %942 = vperm.xlu0 %941, %v940
    %v943 = vpop.permute.xlu0 %942
    %v945 = vadd.f32 %v913, %v943
    %v946 = vadd.f32 %v916, %v943
    %v947 = vadd.f32 %v919, %v943
    %v948 = vadd.f32 %v922, %v943
    %v949 = vadd.f32 %v925, %v943
    %v950 = vadd.f32 %v928, %v943
    %v951 = vadd.f32 %v931, %v943
    %v952 = vadd.f32 %v934, %v943
    %v961 = vlaneseq
    %v962 = vand.u32 %v961, 127
    %v963 = vlaneseq
    %v964 = vshrl.u32 %v963, 7
    %v965 = vsub.s32 %v962, %v964
    %v966 = vrot.slane %v945, %v965
    %v967 = vlaneseq
    %v968 = vshrl.u32 %v967, 7
    %v969 = vsub.s32 %v962, %v968
    %v970 = vrot.slane %v946, %v969
    %v971 = vlaneseq
    %v972 = vshrl.u32 %v971, 7
    %v973 = vsub.s32 %v962, %v972
    %v974 = vrot.slane %v947, %v973
    %v975 = vlaneseq
    %v976 = vshrl.u32 %v975, 7
    %v977 = vsub.s32 %v962, %v976
    %v978 = vrot.slane %v948, %v977
    %v979 = vlaneseq
    %v980 = vshrl.u32 %v979, 7
    %v981 = vsub.s32 %v962, %v980
    %v982 = vrot.slane %v949, %v981
    %v983 = vlaneseq
    %v984 = vshrl.u32 %v983, 7
    %v985 = vsub.s32 %v962, %v984
    %v986 = vrot.slane %v950, %v985
    %v987 = vlaneseq
    %v988 = vshrl.u32 %v987, 7
    %v989 = vsub.s32 %v962, %v988
    %v990 = vrot.slane %v951, %v989
    %v991 = vlaneseq
    %v992 = vshrl.u32 %v991, 7
    %v993 = vsub.s32 %v962, %v992
    %v994 = vrot.slane %v952, %v993
    %vm995 = vcmask 1041409
    %v996 = vsel %vm995, %v970, %v966
    %vm997 = vcmask 1042434
    %v998 = vsel %vm997, %v974, %v996
    %vm999 = vcmask 1043459
    %v1000 = vsel %vm999, %v978, %v998
    %vm1001 = vcmask 1044484
    %v1002 = vsel %vm1001, %v982, %v1000
    %vm1003 = vcmask 1045509
    %v1004 = vsel %vm1003, %v986, %v1002
    %vm1005 = vcmask 1046534
    %v1006 = vsel %vm1005, %v990, %v1004
    %vm1007 = vcmask 1047559
    %v1008 = vsel %vm1007, %v994, %v1006
    %vm1010 = vcmask 64512
    %1011 = vst.msk [vmem:[#allocation9] sm:$0xff] %vm1010, %v1008
    %v1012 = vsel %vm1010, %v1008, -inf
    %1013 = vmax.xlane.f32.xlu0 %v1012
    %v1014 = vpop.xlane.xlu0 %1013
    %v1016 = vlaneseq
    %v1017 = vshrl.u32 %v1016, 7
    %v1018 = vsub.s32 0, %v1017
    %v1019 = vrot.slane %v1014, %v1018
    %v1020 = vlaneseq
    %v1021 = vshrl.u32 %v1020, 7
    %v1022 = vsub.s32 1, %v1021
    %v1023 = vrot.slane %v1014, %v1022
    %v1024 = vlaneseq
    %v1025 = vshrl.u32 %v1024, 7
    %v1026 = vsub.s32 2, %v1025
    %v1027 = vrot.slane %v1014, %v1026
    %v1028 = vlaneseq
    %v1029 = vshrl.u32 %v1028, 7
    %v1030 = vsub.s32 3, %v1029
    %v1031 = vrot.slane %v1014, %v1030
    %v1032 = vlaneseq
    %v1033 = vshrl.u32 %v1032, 7
    %v1034 = vsub.s32 4, %v1033
    %v1035 = vrot.slane %v1014, %v1034
    %v1036 = vlaneseq
    %v1037 = vshrl.u32 %v1036, 7
    %v1038 = vsub.s32 5, %v1037
    %v1039 = vrot.slane %v1014, %v1038
    %v1040 = vlaneseq
    %v1041 = vshrl.u32 %v1040, 7
    %v1042 = vsub.s32 6, %v1041
    %v1043 = vrot.slane %v1014, %v1042
    %v1044 = vlaneseq
    %v1045 = vshrl.u32 %v1044, 7
    %v1046 = vsub.s32 7, %v1045
    %v1047 = vrot.slane %v1014, %v1046
    %v1056 = vsub.f32 %v945, %v1019
    %v1057 = vsub.f32 %v946, %v1023
    %v1058 = vsub.f32 %v947, %v1027
    %v1059 = vsub.f32 %v948, %v1031
    %v1060 = vsub.f32 %v949, %v1035
    %v1061 = vsub.f32 %v950, %v1039
    %v1062 = vsub.f32 %v951, %v1043
    %v1063 = vsub.f32 %v952, %v1047
    %v1064 = vmul.f32 %v1056, 1.442695
    %v1065 = vpow.pop %v1064
    %v1066 = vmul.f32 %v1057, 1.442695
    %v1067 = vpow.pop %v1066
    %v1068 = vmul.f32 %v1058, 1.442695
    %v1069 = vpow.pop %v1068
    %v1070 = vmul.f32 %v1059, 1.442695
    %v1071 = vpow.pop %v1070
    %v1072 = vmul.f32 %v1060, 1.442695
    %v1073 = vpow.pop %v1072
    %v1074 = vmul.f32 %v1061, 1.442695
    %v1075 = vpow.pop %v1074
    %v1076 = vmul.f32 %v1062, 1.442695
    %v1077 = vpow.pop %v1076
    %v1078 = vmul.f32 %v1063, 1.442695
    %v1079 = vpow.pop %v1078
    %1088 = vset.pattern.permute.xlu0 0
    %1089 = vperm.xlu0 %1088, %v1065
    %v1090 = vpop.permute.xlu0 %1089
    %1091 = vset.pattern.permute.xlu0 0
    %1092 = vperm.xlu0 %1091, %v1067
    %v1093 = vpop.permute.xlu0 %1092
    %1094 = vset.pattern.permute.xlu0 0
    %1095 = vperm.xlu0 %1094, %v1069
    %v1096 = vpop.permute.xlu0 %1095
    %1097 = vset.pattern.permute.xlu0 0
    %1098 = vperm.xlu0 %1097, %v1071
    %v1099 = vpop.permute.xlu0 %1098
    %1100 = vset.pattern.permute.xlu0 0
    %1101 = vperm.xlu0 %1100, %v1073
    %v1102 = vpop.permute.xlu0 %1101
    %1103 = vset.pattern.permute.xlu0 0
    %1104 = vperm.xlu0 %1103, %v1075
    %v1105 = vpop.permute.xlu0 %1104
    %1106 = vset.pattern.permute.xlu0 0
    %1107 = vperm.xlu0 %1106, %v1077
    %v1108 = vpop.permute.xlu0 %1107
    %1109 = vset.pattern.permute.xlu0 0
    %1110 = vperm.xlu0 %1109, %v1079
    %v1111 = vpop.permute.xlu0 %1110
    %v1112 = vlaneseq
    %v1113 = vshrl.u32 %v1112, 7
    %v1114 = vsub.s32 %v962, %v1113
    %v1115 = vrot.slane %v1090, %v1114
    %v1116 = vlaneseq
    %v1117 = vshrl.u32 %v1116, 7
    %v1118 = vsub.s32 %v962, %v1117
    %v1119 = vrot.slane %v1093, %v1118
    %v1120 = vlaneseq
    %v1121 = vshrl.u32 %v1120, 7
    %v1122 = vsub.s32 %v962, %v1121
    %v1123 = vrot.slane %v1096, %v1122
    %v1124 = vlaneseq
    %v1125 = vshrl.u32 %v1124, 7
    %v1126 = vsub.s32 %v962, %v1125
    %v1127 = vrot.slane %v1099, %v1126
    %v1128 = vlaneseq
    %v1129 = vshrl.u32 %v1128, 7
    %v1130 = vsub.s32 %v962, %v1129
    %v1131 = vrot.slane %v1102, %v1130
    %v1132 = vlaneseq
    %v1133 = vshrl.u32 %v1132, 7
    %v1134 = vsub.s32 %v962, %v1133
    %v1135 = vrot.slane %v1105, %v1134
    %v1136 = vlaneseq
    %v1137 = vshrl.u32 %v1136, 7
    %v1138 = vsub.s32 %v962, %v1137
    %v1139 = vrot.slane %v1108, %v1138
    %v1140 = vlaneseq
    %v1141 = vshrl.u32 %v1140, 7
    %v1142 = vsub.s32 %v962, %v1141
    %v1143 = vrot.slane %v1111, %v1142
    %v1144 = vsel %vm995, %v1119, %v1115
    %v1145 = vsel %vm997, %v1123, %v1144
    %v1146 = vsel %vm999, %v1127, %v1145
    %v1147 = vsel %vm1001, %v1131, %v1146
    %v1148 = vsel %vm1003, %v1135, %v1147
    %v1149 = vsel %vm1005, %v1139, %v1148
    %v1150 = vsel %vm1007, %v1143, %v1149
    %v1152 = vsel %vm1010, %v1150, 0.0
    %1153 = vadd.xlane.f32.xlu0 %v1152
    %v1154 = vpop.xlane.xlu0 %1153
    %v1156 = vlaneseq
    %v1157 = vshrl.u32 %v1156, 7
    %v1158 = vsub.s32 0, %v1157
    %v1159 = vrot.slane %v1154, %v1158
    %v1160 = vlaneseq
    %v1161 = vshrl.u32 %v1160, 7
    %v1162 = vsub.s32 1, %v1161
    %v1163 = vrot.slane %v1154, %v1162
    %v1164 = vlaneseq
    %v1165 = vshrl.u32 %v1164, 7
    %v1166 = vsub.s32 2, %v1165
    %v1167 = vrot.slane %v1154, %v1166
    %v1168 = vlaneseq
    %v1169 = vshrl.u32 %v1168, 7
    %v1170 = vsub.s32 3, %v1169
    %v1171 = vrot.slane %v1154, %v1170
    %v1172 = vlaneseq
    %v1173 = vshrl.u32 %v1172, 7
    %v1174 = vsub.s32 4, %v1173
    %v1175 = vrot.slane %v1154, %v1174
    %v1176 = vlaneseq
    %v1177 = vshrl.u32 %v1176, 7
    %v1178 = vsub.s32 5, %v1177
    %v1179 = vrot.slane %v1154, %v1178
    %v1180 = vlaneseq
    %v1181 = vshrl.u32 %v1180, 7
    %v1182 = vsub.s32 6, %v1181
    %v1183 = vrot.slane %v1154, %v1182
    %v1184 = vlaneseq
    %v1185 = vshrl.u32 %v1184, 7
    %v1186 = vsub.s32 7, %v1185
    %v1187 = vrot.slane %v1154, %v1186
    %v1196 = vrcp.pop %v1159
    %v1197 = vmul.f32 %v1065, %v1196
    %v1198 = vrcp.pop %v1163
    %v1199 = vmul.f32 %v1067, %v1198
    %v1200 = vrcp.pop %v1167
    %v1201 = vmul.f32 %v1069, %v1200
    %v1202 = vrcp.pop %v1171
    %v1203 = vmul.f32 %v1071, %v1202
    %v1204 = vrcp.pop %v1175
    %v1205 = vmul.f32 %v1073, %v1204
    %v1206 = vrcp.pop %v1179
    %v1207 = vmul.f32 %v1075, %v1206
    %v1208 = vrcp.pop %v1183
    %v1209 = vmul.f32 %v1077, %v1208
    %v1210 = vrcp.pop %v1187
    %v1211 = vmul.f32 %v1079, %v1210
    %v1212 = vld [vmem:[#allocation6] sm:$0xff]
    %v1213 = vld [vmem:[#allocation6 + $0x8] sm:$0xff]
    %v1214 = vld [vmem:[#allocation6 + $0x10] sm:$0xff]
    %v1215 = vld [vmem:[#allocation6 + $0x18] sm:$0xff]
    %v1216 = vld [vmem:[#allocation6 + $0x20] sm:$0xff]
    %v1217 = vld [vmem:[#allocation6 + $0x28] sm:$0xff]
    %v1218 = vld [vmem:[#allocation6 + $0x30] sm:$0xff]
    %v1219 = vld [vmem:[#allocation6 + $0x38] sm:$0xff]
    %1221 = vset.pattern.permute.xlu0 0
    %1222 = vperm.xlu0 %1221, %v1197
    %v1223 = vpop.permute.xlu0 %1222
    %1226 = vset.pattern.permute.xlu0 0
    %1227 = vperm.xlu0 %1226, %v1199
    %v1228 = vpop.permute.xlu0 %1227
    %1231 = vset.pattern.permute.xlu0 0
    %1232 = vperm.xlu0 %1231, %v1201
    %v1233 = vpop.permute.xlu0 %1232
    %1236 = vset.pattern.permute.xlu0 0
    %1237 = vperm.xlu0 %1236, %v1203
    %v1238 = vpop.permute.xlu0 %1237
    %1241 = vset.pattern.permute.xlu0 0
    %1242 = vperm.xlu0 %1241, %v1205
    %v1243 = vpop.permute.xlu0 %1242
    %1246 = vset.pattern.permute.xlu0 0
    %1247 = vperm.xlu0 %1246, %v1207
    %v1248 = vpop.permute.xlu0 %1247
    %1251 = vset.pattern.permute.xlu0 0
    %1252 = vperm.xlu0 %1251, %v1209
    %v1253 = vpop.permute.xlu0 %1252
    %1256 = vset.pattern.permute.xlu0 0
    %1257 = vperm.xlu0 %1256, %v1211
    %v1258 = vpop.permute.xlu0 %1257
    %v1260 = vmul.f32 %v1223, %v1212
    %v1261 = vmul.f32 %v1228, %v1213
    %v1262 = vmul.f32 %v1233, %v1214
    %v1263 = vmul.f32 %v1238, %v1215
    %v1264 = vmul.f32 %v1243, %v1216
    %v1265 = vmul.f32 %v1248, %v1217
    %v1266 = vmul.f32 %v1253, %v1218
    %v1267 = vmul.f32 %v1258, %v1219
    %v1268 = vsel %vm76, %v1260, 0.0
    %v1269 = vrot.slane %v1268, 4
    %v1270 = vadd.f32 %v1268, %v1269
    %v1271 = vrot.slane %v1270, 2
    %v1272 = vadd.f32 %v1270, %v1271
    %v1273 = vrot.slane %v1272, 1
    %v1274 = vadd.f32 %v1272, %v1273
    %v1275 = vsel %vm76, %v1261, 0.0
    %v1276 = vrot.slane %v1275, 4
    %v1277 = vadd.f32 %v1275, %v1276
    %v1278 = vrot.slane %v1277, 2
    %v1279 = vadd.f32 %v1277, %v1278
    %v1280 = vrot.slane %v1279, 1
    %v1281 = vadd.f32 %v1279, %v1280
    %v1282 = vsel %vm76, %v1262, 0.0
    %v1283 = vrot.slane %v1282, 4
    %v1284 = vadd.f32 %v1282, %v1283
    %v1285 = vrot.slane %v1284, 2
    %v1286 = vadd.f32 %v1284, %v1285
    %v1287 = vrot.slane %v1286, 1
    %v1288 = vadd.f32 %v1286, %v1287
    %v1289 = vsel %vm76, %v1263, 0.0
    %v1290 = vrot.slane %v1289, 4
    %v1291 = vadd.f32 %v1289, %v1290
    %v1292 = vrot.slane %v1291, 2
    %v1293 = vadd.f32 %v1291, %v1292
    %v1294 = vrot.slane %v1293, 1
    %v1295 = vadd.f32 %v1293, %v1294
    %v1296 = vsel %vm76, %v1264, 0.0
    %v1297 = vrot.slane %v1296, 4
    %v1298 = vadd.f32 %v1296, %v1297
    %v1299 = vrot.slane %v1298, 2
    %v1300 = vadd.f32 %v1298, %v1299
    %v1301 = vrot.slane %v1300, 1
    %v1302 = vadd.f32 %v1300, %v1301
    %v1303 = vsel %vm76, %v1265, 0.0
    %v1304 = vrot.slane %v1303, 4
    %v1305 = vadd.f32 %v1303, %v1304
    %v1306 = vrot.slane %v1305, 2
    %v1307 = vadd.f32 %v1305, %v1306
    %v1308 = vrot.slane %v1307, 1
    %v1309 = vadd.f32 %v1307, %v1308
    %v1310 = vsel %vm76, %v1266, 0.0
    %v1311 = vrot.slane %v1310, 4
    %v1312 = vadd.f32 %v1310, %v1311
    %v1313 = vrot.slane %v1312, 2
    %v1314 = vadd.f32 %v1312, %v1313
    %v1315 = vrot.slane %v1314, 1
    %v1316 = vadd.f32 %v1314, %v1315
    %v1317 = vsel %vm76, %v1267, 0.0
    %v1318 = vrot.slane %v1317, 4
    %v1319 = vadd.f32 %v1317, %v1318
    %v1320 = vrot.slane %v1319, 2
    %v1321 = vadd.f32 %v1319, %v1320
    %v1322 = vrot.slane %v1321, 1
    %v1323 = vadd.f32 %v1321, %v1322
    %v1332 = vsel %vm995, %v1281, %v1274
    %v1333 = vsel %vm997, %v1288, %v1332
    %v1334 = vsel %vm999, %v1295, %v1333
    %v1335 = vsel %vm1001, %v1302, %v1334
    %v1336 = vsel %vm1003, %v1309, %v1335
    %v1337 = vsel %vm1005, %v1316, %v1336
    %v1338 = vsel %vm1007, %v1323, %v1337
    %1340 = vst.msk [vmem:[#allocation8] sm:$0xff] %vm76, %v1338
    // Predicated region
    $region34: #{tpu_custom_call.1} parent=1 // pred_check
      _
    $region35: #{tpu_custom_call.1} parent=1 // pred_check_branch
      %1342 = sbr.rel (0) target = $region37
    $region36: #{tpu_custom_call.1} parent=1 // pred_region
      %s1344 = ssub.s32 128, 128
      %1345 = vsyncadd [#allocation5], %s1344
      %s1347 = sshll.u32 [#allocation8], 4
      %s1348 = int_to_ptr.vmem [resolvable:$true] %s1347
      %1350 = dma.vmem_to_hbm [thread:$0]  %s1348, 128, %s6, [#allocation5]
    $region37: #{tpu_custom_call.1} parent=1 // pred_fallthru
      _
    // Predicated region
    $region38: #{tpu_custom_call.1} parent=1 // pred_check
      _
    $region39: #{tpu_custom_call.1} parent=1 // pred_check_branch
      %1352 = sbr.rel (0) target = $region41
    $region40: #{tpu_custom_call.1} parent=1 // pred_region
      %s1354 = ssub.s32 128, 128
      %1355 = vsyncadd [#allocation10], %s1354
      %s1357 = sshll.u32 [#allocation9], 4
      %s1358 = int_to_ptr.vmem [resolvable:$true] %s1357
      %1360 = dma.vmem_to_hbm [thread:$0]  %s1358, 128, %s7, [#allocation10]
    $region41: #{tpu_custom_call.1} parent=1 // pred_fallthru
      _
    // Predicated region
    $region42: #{tpu_custom_call.1} parent=1 // pred_check
      _
    $region43: #{tpu_custom_call.1} parent=1 // pred_check_branch
      %1362 = sbr.rel (0) target = $region45
    $region44: #{tpu_custom_call.1} parent=1 // pred_region
      %1363 = dma.done [#allocation5], 128
    $region45: #{tpu_custom_call.1} parent=1 // pred_fallthru
      _
    // Predicated region
    $region46: #{tpu_custom_call.1} parent=1 // pred_check
      _
    $region47: #{tpu_custom_call.1} parent=1 // pred_check_branch
      %1365 = sbr.rel (0) target = $region49
    $region48: #{tpu_custom_call.1} parent=1 // pred_region
      %1366 = dma.done [#allocation10], 128
    $region49: #{tpu_custom_call.1} parent=1 // pred_fallthru
      _
    %1367 = vsyncpa [#allocation4], 1
    %1368 = vsyncpa [#allocation7], 1
    %1369 = vsyncpa [#allocation5], 1
    %1370 = vsyncpa [#allocation10], 1

</llo_original>
